<compile_context>
chip_gen: v7x
topology: tpu7x:2x2x1
jax: 0.10.0
libtpu: 0.0.40
codegen_flags: <defaults>
</compile_context>

<pallas_src>
import math

import jax
import jax.numpy as jnp
from jax.experimental import pallas as pl
from jax.experimental.pallas import tpu as pltpu

D_MODEL = 32
N_HEADS = 4
DIM_FF = 32          # must equal D_MODEL (see NOTE above)
HEAD_DIM = D_MODEL // N_HEADS
EPS = 1e-5           # layer_norm_eps

assert DIM_FF == D_MODEL, "reference code is only valid when dim_feedforward == d_model"

# ---------------------------------------------------------------------------
# Packed parameter slab layout: a single (PROWS, 3*SEG) f32 array.
#   rows [0,32)  : [ wq*scale | wk | wv ]   each (32,32) at lane segments 0/128/256
#   rows [32,64) : [ wo       | w1 | w2 ]   each (32,32) at lane segments 0/128/256
#   row  64      : [ bq*scale | bk | bv ]
#   row  65      : [ bo       | b1 | b2 ]
#   row  66      : [ g1       | g2 | -  ]
#   row  67      : [ be1      | be2| -  ]
#   rows 68..71  : zero padding (sublane multiple of 8)
# ---------------------------------------------------------------------------
SEG = 128
PCOLS = 3 * SEG
ROW_WQKV = 0
ROW_WOUT = D_MODEL
ROW_BQKV = 2 * D_MODEL
ROW_BOUT = ROW_BQKV + 1
ROW_LN_G = ROW_BQKV + 2
ROW_LN_B = ROW_BQKV + 3
PROWS = 72

PARAM_ORDER = ["wq", "bq", "wk", "bk", "wv", "bv", "wo", "bo",
               "w1", "b1", "w2", "b2", "g1", "be1", "g2", "be2"]


def _layer_norm(x, gamma, beta):
    mean = jnp.mean(x, axis=-1, keepdims=True)
    var = jnp.mean(jnp.square(x - mean), axis=-1, keepdims=True)
    return (x - mean) * jax.lax.rsqrt(var + EPS) * gamma + beta


# ---------------------------------------------------------------------------
# Pallas kernel: one grid step = one batch element (S, D_MODEL).
# ---------------------------------------------------------------------------
def encoder_layer_kernel(x_ref, p_ref, o_ref):
    seq = x_ref.shape[1]
    x = x_ref[0]                                                  # (S, D)

    # Fused, lane-aligned QKV projection (attention scale already folded into wq / bq).
    w_qkv = p_ref[ROW_WQKV:ROW_WQKV + D_MODEL, :]                 # (D, 384)
    b_qkv = p_ref[ROW_BQKV:ROW_BQKV + 1, :]                       # (1, 384)
    qkv = jnp.dot(x, w_qkv, preferred_element_type=jnp.float32) + b_qkv   # (S, 384)

    # Head-leading (H, S, hd) views of q / k / v (each 128-lane segment starts at lane 0).
    def heads(seg):
        base = seg * SEG
        return jnp.stack(
            [qkv[:, base + h * HEAD_DIM: base + (h + 1) * HEAD_DIM]
             for h in range(N_HEADS)], axis=0)                    # (H, S, hd)

    qh, kh, vh = heads(0), heads(1), heads(2)

    # Single batched-over-heads attention contraction + one softmax.
    s = jnp.einsum("hqd,hkd->hqk", qh, kh,
                   preferred_element_type=jnp.float32)            # (H, S, S)
    s = s - jnp.max(s, axis=-1, keepdims=True)
    p = jnp.exp(s)
    p = p * pl.reciprocal(jnp.sum(p, axis=-1, keepdims=True), approx=True)
    ctx = jnp.einsum("hqk,hkd->hqd", p, vh,
                     preferred_element_type=jnp.float32)          # (H, S, hd)

    # Head merge folded into the output projection: wo viewed as (H, hd, D), sum heads.
    wo_h = p_ref[ROW_WOUT:ROW_WOUT + D_MODEL, 0:D_MODEL].reshape(
        N_HEADS, HEAD_DIM, D_MODEL)
    bo = p_ref[ROW_BOUT:ROW_BOUT + 1, 0:D_MODEL]
    sa = jnp.einsum("hqd,hdm->hqm", ctx, wo_h,
                    preferred_element_type=jnp.float32).sum(axis=0) + bo   # (S, D)

    # Residual + post-norm (dropout1 = identity at inference).
    g1 = p_ref[ROW_LN_G:ROW_LN_G + 1, 0:D_MODEL]
    be1 = p_ref[ROW_LN_B:ROW_LN_B + 1, 0:D_MODEL]
    h1 = _layer_norm(x + sa, g1, be1)

    # Feed-forward: lin2(dropout(gelu(lin1(x)))), dropout = identity.
    w1 = p_ref[ROW_WOUT:ROW_WOUT + D_MODEL, SEG:SEG + DIM_FF]
    b1 = p_ref[ROW_BOUT:ROW_BOUT + 1, SEG:SEG + DIM_FF]
    w2 = p_ref[ROW_WOUT:ROW_WOUT + DIM_FF, 2 * SEG:2 * SEG + D_MODEL]
    b2 = p_ref[ROW_BOUT:ROW_BOUT + 1, 2 * SEG:2 * SEG + D_MODEL]

    ff = jnp.dot(h1, w1, preferred_element_type=jnp.float32) + b1
    ff = jax.nn.gelu(ff, approximate=True)        # tanh GELU -> EUP (erf is a VALU polynomial)
    ff = jnp.dot(ff, w2, preferred_element_type=jnp.float32) + b2

    # norm2 applied to FF output, NO residual (faithful to the reference code).
    g2 = p_ref[ROW_LN_G:ROW_LN_G + 1, SEG:SEG + DIM_FF]
    be2 = p_ref[ROW_LN_B:ROW_LN_B + 1, SEG:SEG + DIM_FF]
    out = _layer_norm(ff, g2, be2)

    o_ref[...] = out.reshape(o_ref.shape).astype(o_ref.dtype)


# ---------------------------------------------------------------------------
# Wrapper: parameter packing (HBM-side, outside the hot path) + pallas_call.
# ---------------------------------------------------------------------------
def prepare_params(params):
    scale = 1.0 / math.sqrt(HEAD_DIM)
    P = jnp.zeros((PROWS, PCOLS), jnp.float32)
    # QKV weights (scale folded into wq, in f32).
    P = P.at[ROW_WQKV:ROW_WQKV + D_MODEL, 0 * SEG:0 * SEG + D_MODEL].set(params["wq"] * scale)
    P = P.at[ROW_WQKV:ROW_WQKV + D_MODEL, 1 * SEG:1 * SEG + D_MODEL].set(params["wk"])
    P = P.at[ROW_WQKV:ROW_WQKV + D_MODEL, 2 * SEG:2 * SEG + D_MODEL].set(params["wv"])
    # Output-projection / FF weights.
    P = P.at[ROW_WOUT:ROW_WOUT + D_MODEL, 0 * SEG:0 * SEG + D_MODEL].set(params["wo"])
    P = P.at[ROW_WOUT:ROW_WOUT + D_MODEL, 1 * SEG:1 * SEG + DIM_FF].set(params["w1"])
    P = P.at[ROW_WOUT:ROW_WOUT + DIM_FF, 2 * SEG:2 * SEG + D_MODEL].set(params["w2"])
    # Vectors.
    P = P.at[ROW_BQKV:ROW_BQKV + 1, 0 * SEG:0 * SEG + D_MODEL].set(params["bq"] * scale)
    P = P.at[ROW_BQKV:ROW_BQKV + 1, 1 * SEG:1 * SEG + D_MODEL].set(params["bk"])
    P = P.at[ROW_BQKV:ROW_BQKV + 1, 2 * SEG:2 * SEG + D_MODEL].set(params["bv"])
    P = P.at[ROW_BOUT:ROW_BOUT + 1, 0 * SEG:0 * SEG + D_MODEL].set(params["bo"])
    P = P.at[ROW_BOUT:ROW_BOUT + 1, 1 * SEG:1 * SEG + DIM_FF].set(params["b1"])
    P = P.at[ROW_BOUT:ROW_BOUT + 1, 2 * SEG:2 * SEG + D_MODEL].set(params["b2"])
    P = P.at[ROW_LN_G:ROW_LN_G + 1, 0 * SEG:0 * SEG + D_MODEL].set(params["g1"])
    P = P.at[ROW_LN_G:ROW_LN_G + 1, 1 * SEG:1 * SEG + DIM_FF].set(params["g2"])
    P = P.at[ROW_LN_B:ROW_LN_B + 1, 0 * SEG:0 * SEG + D_MODEL].set(params["be1"])
    P = P.at[ROW_LN_B:ROW_LN_B + 1, 1 * SEG:1 * SEG + DIM_FF].set(params["be2"])
    return P


def transformer_encoder_layer(x, params):
    B, S, D = x.shape
    assert D == D_MODEL and DIM_FF == D_MODEL
    pslab = prepare_params(params)                               # single (72, 384) slab

    out = pl.pallas_call(
        encoder_layer_kernel,
        out_shape=jax.ShapeDtypeStruct((B, S, D), x.dtype),
        grid_spec=pltpu.PrefetchScalarGridSpec(
            num_scalar_prefetch=0,
            grid=(B,),                            # batch axis -> parallel (2nd TC on v7x)
            in_specs=[
                pl.BlockSpec((1, S, D), lambda b: (b, 0, 0)),
                pl.BlockSpec((PROWS, PCOLS), lambda b: (0, 0)),   # one resident param DMA
            ],
            out_specs=pl.BlockSpec((1, S, D), lambda b: (b, 0, 0)),
        ),
        compiler_params=pltpu.CompilerParams(
            dimension_semantics=("parallel",)),
    )(x, pslab)
    return out


# ---------------------------------------------------------------------------
# Deterministic synthetic parameters (shapes from the module __init__).
# ---------------------------------------------------------------------------
def init_params(key):
    keys = jax.random.split(key, 16)
    it = iter(keys)

    def lin(fan_in, fan_out):
        w = jax.random.normal(next(it), (fan_in, fan_out), jnp.float32) / math.sqrt(fan_in)
        b = jax.random.normal(next(it), (1, fan_out), jnp.float32) * 0.02
        return w, b

    p = {}
    p["wq"], p["bq"] = lin(D_MODEL, D_MODEL)
    p["wk"], p["bk"] = lin(D_MODEL, D_MODEL)
    p["wv"], p["bv"] = lin(D_MODEL, D_MODEL)
    p["wo"], p["bo"] = lin(D_MODEL, D_MODEL)
    p["w1"], p["b1"] = lin(D_MODEL, DIM_FF)     # self.lin1
    p["w2"], p["b2"] = lin(DIM_FF, D_MODEL)     # self.lin2
    p["g1"] = jnp.ones((1, D_MODEL), jnp.float32)    # norm1 weight
    p["be1"] = jnp.zeros((1, D_MODEL), jnp.float32)  # norm1 bias
    p["g2"] = jnp.ones((1, DIM_FF), jnp.float32)     # norm2 weight
    p["be2"] = jnp.zeros((1, DIM_FF), jnp.float32)   # norm2 bias
    return p


# ---------------------------------------------------------------------------
# Pure-JAX reference (unfused, exact softmax divide, exact erf GELU) for validation.
# ---------------------------------------------------------------------------
def _encoder_math_ref(x, wq, bq, wk, bk, wv, bv, wo, bo,
                      w1, b1, w2, b2, g1, be1, g2, be2):
    q = x @ wq + bq
    k = x @ wk + bk
    v = x @ wv + bv
    scale = 1.0 / math.sqrt(HEAD_DIM)
    heads = []
    for h in range(N_HEADS):
        sl = slice(h * HEAD_DIM, (h + 1) * HEAD_DIM)
        s = (q[:, sl] @ k[:, sl].T) * scale
        p = jax.nn.softmax(s, axis=-1)
        heads.append(p @ v[:, sl])
    attn = jnp.concatenate(heads, axis=-1)
    sa = attn @ wo + bo
    h1 = _layer_norm(x + sa, g1, be1)
    ff = h1 @ w1 + b1
    ff = jax.nn.gelu(ff, approximate=False)
    ff = ff @ w2 + b2
    return _layer_norm(ff, g2, be2)


def reference(x, params):
    weights = [params[k] for k in PARAM_ORDER]
    return jax.vmap(lambda xb: _encoder_math_ref(xb, *weights))(x)


if __name__ == "__main__":
    key = jax.random.PRNGKey(0)
    kx, kp = jax.random.split(key)

    B, S = 2, 8
    x = jax.random.normal(kx, (B, S, D_MODEL), jnp.float32)
    params = init_params(kp)

    out = transformer_encoder_layer(x, params)
    out = jax.block_until_ready(out)

    ref = reference(x, params)
    assert out.shape == (B, S, D_MODEL)
    assert bool(jnp.allclose(out, ref, atol=2e-2, rtol=2e-2)), "Pallas output mismatch vs JAX reference"

    print("KERNEL_OK")
</pallas_src>

<mosaic_0001>
module attributes {stable_mosaic.version = 11 : i64} {
  func.func @encoder_layer_kernel(%arg0: i32, %arg1: memref<1x8x32xf32, #tpu.memory_space<vmem>>, %arg2: memref<72x384xf32, #tpu.memory_space<vmem>>, %arg3: memref<1x8x32xf32, #tpu.memory_space<vmem>>) attributes {dimension_semantics = [#tpu.dimension_semantics<parallel>], iteration_bounds = array<i64: 2>, scalar_prefetch = 0 : i64, scratch_operands = 0 : i64, tpu.core_type = #tpu.core_type<tc>, window_params = [{transform_indices = @transform_0, window_bounds = array<i64: 1, 8, 32>}, {pipeline_mode = #tpu.pipeline_mode<synchronous>, transform_indices = @transform_1, window_bounds = array<i64: 72, 384>}, {transform_indices = @transform_2, window_bounds = array<i64: 1, 8, 32>}]} {
    %c0 = arith.constant 0 : index
    %c0_0 = arith.constant 0 : index
    %c0_1 = arith.constant 0 : index
    %0 = vector.load %arg1[%c0, %c0_0, %c0_1] : memref<1x8x32xf32, #tpu.memory_space<vmem>>, vector<1x8x32xf32>
    %1 = vector.shape_cast %0 : vector<1x8x32xf32> to vector<8x32xf32>
    %c0_2 = arith.constant 0 : index
    %c0_3 = arith.constant 0 : index
    %2 = vector.load %arg2[%c0_2, %c0_3] : memref<72x384xf32, #tpu.memory_space<vmem>>, vector<32x384xf32>
    %c64 = arith.constant 64 : index
    %c0_4 = arith.constant 0 : index
    %3 = vector.load %arg2[%c64, %c0_4] : memref<72x384xf32, #tpu.memory_space<vmem>>, vector<1x384xf32>
    %cst = arith.constant dense<0.000000e+00> : vector<8x384xf32>
    %4 = tpu.matmul %1, %2, %cst {dimension_numbers = #tpu.dot_dimension_numbers<[1], [0], [0], [1], [0, 0, 1, 1], [], []>} : vector<8x32xf32>, vector<32x384xf32>, vector<8x384xf32> -> vector<8x384xf32>
    %5 = vector.broadcast %3 : vector<1x384xf32> to vector<8x384xf32>
    %6 = arith.addf %4, %5 : vector<8x384xf32>
    %7 = vector.extract_strided_slice %6 {offsets = [0, 0], sizes = [8, 8], strides = [1, 1]} : vector<8x384xf32> to vector<8x8xf32>
    %8 = vector.extract_strided_slice %6 {offsets = [0, 8], sizes = [8, 8], strides = [1, 1]} : vector<8x384xf32> to vector<8x8xf32>
    %9 = vector.extract_strided_slice %6 {offsets = [0, 16], sizes = [8, 8], strides = [1, 1]} : vector<8x384xf32> to vector<8x8xf32>
    %10 = vector.extract_strided_slice %6 {offsets = [0, 24], sizes = [8, 8], strides = [1, 1]} : vector<8x384xf32> to vector<8x8xf32>
    %11 = vector.shape_cast %7 : vector<8x8xf32> to vector<1x8x8xf32>
    %12 = vector.shape_cast %8 : vector<8x8xf32> to vector<1x8x8xf32>
    %13 = vector.shape_cast %9 : vector<8x8xf32> to vector<1x8x8xf32>
    %14 = vector.shape_cast %10 : vector<8x8xf32> to vector<1x8x8xf32>
    %15 = tpu.concatenate %11, %12, %13, %14 in 0 : vector<1x8x8xf32>, vector<1x8x8xf32>, vector<1x8x8xf32>, vector<1x8x8xf32> -> vector<4x8x8xf32>
    %16 = vector.extract_strided_slice %6 {offsets = [0, 128], sizes = [8, 8], strides = [1, 1]} : vector<8x384xf32> to vector<8x8xf32>
    %17 = vector.extract_strided_slice %6 {offsets = [0, 136], sizes = [8, 8], strides = [1, 1]} : vector<8x384xf32> to vector<8x8xf32>
    %18 = vector.extract_strided_slice %6 {offsets = [0, 144], sizes = [8, 8], strides = [1, 1]} : vector<8x384xf32> to vector<8x8xf32>
    %19 = vector.extract_strided_slice %6 {offsets = [0, 152], sizes = [8, 8], strides = [1, 1]} : vector<8x384xf32> to vector<8x8xf32>
    %20 = vector.shape_cast %16 : vector<8x8xf32> to vector<1x8x8xf32>
    %21 = vector.shape_cast %17 : vector<8x8xf32> to vector<1x8x8xf32>
    %22 = vector.shape_cast %18 : vector<8x8xf32> to vector<1x8x8xf32>
    %23 = vector.shape_cast %19 : vector<8x8xf32> to vector<1x8x8xf32>
    %24 = tpu.concatenate %20, %21, %22, %23 in 0 : vector<1x8x8xf32>, vector<1x8x8xf32>, vector<1x8x8xf32>, vector<1x8x8xf32> -> vector<4x8x8xf32>
    %25 = vector.extract_strided_slice %6 {offsets = [0, 256], sizes = [8, 8], strides = [1, 1]} : vector<8x384xf32> to vector<8x8xf32>
    %26 = vector.extract_strided_slice %6 {offsets = [0, 264], sizes = [8, 8], strides = [1, 1]} : vector<8x384xf32> to vector<8x8xf32>
    %27 = vector.extract_strided_slice %6 {offsets = [0, 272], sizes = [8, 8], strides = [1, 1]} : vector<8x384xf32> to vector<8x8xf32>
    %28 = vector.extract_strided_slice %6 {offsets = [0, 280], sizes = [8, 8], strides = [1, 1]} : vector<8x384xf32> to vector<8x8xf32>
    %29 = vector.shape_cast %25 : vector<8x8xf32> to vector<1x8x8xf32>
    %30 = vector.shape_cast %26 : vector<8x8xf32> to vector<1x8x8xf32>
    %31 = vector.shape_cast %27 : vector<8x8xf32> to vector<1x8x8xf32>
    %32 = vector.shape_cast %28 : vector<8x8xf32> to vector<1x8x8xf32>
    %33 = tpu.concatenate %29, %30, %31, %32 in 0 : vector<1x8x8xf32>, vector<1x8x8xf32>, vector<1x8x8xf32>, vector<1x8x8xf32> -> vector<4x8x8xf32>
    "tpu.trace_start"() <{level = 10 : i32, message = "hqd,hkd->hqk"}> : () -> ()
    %cst_5 = arith.constant dense<0.000000e+00> : vector<4x8x8xf32>
    %34 = tpu.matmul %15, %24, %cst_5 {dimension_numbers = #tpu.dot_dimension_numbers<[2], [2], [1], [1], [0, 0, 0, 1, 1, 1], [0], [0]>} : vector<4x8x8xf32>, vector<4x8x8xf32>, vector<4x8x8xf32> -> vector<4x8x8xf32>
    "tpu.trace_stop"() : () -> ()
    %cst_6 = arith.constant dense<0xFF800000> : vector<4x8xf32>
    %35 = vector.multi_reduction <maximumf>, %34, %cst_6 [2] : vector<4x8x8xf32> to vector<4x8xf32>
    %36 = vector.shape_cast %35 : vector<4x8xf32> to vector<4x8x1xf32>
    %37 = vector.broadcast %36 : vector<4x8x1xf32> to vector<4x8x8xf32>
    %38 = arith.subf %34, %37 : vector<4x8x8xf32>
    %39 = math.exp %38 : vector<4x8x8xf32>
    %cst_7 = arith.constant dense<0.000000e+00> : vector<4x8xf32>
    %40 = vector.multi_reduction <add>, %39, %cst_7 [2] : vector<4x8x8xf32> to vector<4x8xf32>
    %41 = vector.shape_cast %40 : vector<4x8xf32> to vector<4x8x1xf32>
    %42 = tpu.reciprocal %41 {approx = true} : vector<4x8x1xf32> -> vector<4x8x1xf32>
    %43 = vector.broadcast %42 : vector<4x8x1xf32> to vector<4x8x8xf32>
    %44 = arith.mulf %39, %43 : vector<4x8x8xf32>
    "tpu.trace_start"() <{level = 10 : i32, message = "hqk,hkd->hqd"}> : () -> ()
    %cst_8 = arith.constant dense<0.000000e+00> : vector<4x8x8xf32>
    %45 = tpu.matmul %44, %33, %cst_8 {dimension_numbers = #tpu.dot_dimension_numbers<[2], [1], [1], [2], [0, 0, 0, 1, 1, 2], [0], [0]>} : vector<4x8x8xf32>, vector<4x8x8xf32>, vector<4x8x8xf32> -> vector<4x8x8xf32>
    "tpu.trace_stop"() : () -> ()
    %c32 = arith.constant 32 : index
    %c0_9 = arith.constant 0 : index
    %46 = vector.load %arg2[%c32, %c0_9] : memref<72x384xf32, #tpu.memory_space<vmem>>, vector<32x32xf32>
    %47 = vector.shape_cast %46 : vector<32x32xf32> to vector<4x8x32xf32>
    %c65 = arith.constant 65 : index
    %c0_10 = arith.constant 0 : index
    %48 = vector.load %arg2[%c65, %c0_10] : memref<72x384xf32, #tpu.memory_space<vmem>>, vector<1x32xf32>
    "tpu.trace_start"() <{level = 10 : i32, message = "hqd,hdm->hqm"}> : () -> ()
    %cst_11 = arith.constant dense<0.000000e+00> : vector<4x8x32xf32>
    %49 = tpu.matmul %45, %47, %cst_11 {dimension_numbers = #tpu.dot_dimension_numbers<[2], [1], [1], [2], [0, 0, 0, 1, 1, 2], [0], [0]>} : vector<4x8x8xf32>, vector<4x8x32xf32>, vector<4x8x32xf32> -> vector<4x8x32xf32>
    "tpu.trace_stop"() : () -> ()
    %cst_12 = arith.constant dense<0.000000e+00> : vector<8x32xf32>
    %50 = vector.multi_reduction <add>, %49, %cst_12 [0] : vector<4x8x32xf32> to vector<8x32xf32>
    %51 = vector.broadcast %48 : vector<1x32xf32> to vector<8x32xf32>
    %52 = arith.addf %50, %51 : vector<8x32xf32>
    %c66 = arith.constant 66 : index
    %c0_13 = arith.constant 0 : index
    %53 = vector.load %arg2[%c66, %c0_13] : memref<72x384xf32, #tpu.memory_space<vmem>>, vector<1x32xf32>
    %c67 = arith.constant 67 : index
    %c0_14 = arith.constant 0 : index
    %54 = vector.load %arg2[%c67, %c0_14] : memref<72x384xf32, #tpu.memory_space<vmem>>, vector<1x32xf32>
    %55 = arith.addf %1, %52 : vector<8x32xf32>
    %cst_15 = arith.constant dense<0.000000e+00> : vector<8xf32>
    %56 = vector.multi_reduction <add>, %55, %cst_15 [1] : vector<8x32xf32> to vector<8xf32>
    %57 = vector.shape_cast %56 : vector<8xf32> to vector<8x1xf32>
    %cst_16 = arith.constant 3.200000e+01 : f32
    %58 = vector.broadcast %cst_16 : f32 to vector<8x1xf32>
    %59 = arith.divf %57, %58 : vector<8x1xf32>
    %60 = vector.broadcast %59 : vector<8x1xf32> to vector<8x32xf32>
    %61 = arith.subf %55, %60 : vector<8x32xf32>
    %62 = arith.mulf %61, %61 : vector<8x32xf32>
    %cst_17 = arith.constant dense<0.000000e+00> : vector<8xf32>
    %63 = vector.multi_reduction <add>, %62, %cst_17 [1] : vector<8x32xf32> to vector<8xf32>
    %64 = vector.shape_cast %63 : vector<8xf32> to vector<8x1xf32>
    %cst_18 = arith.constant 3.200000e+01 : f32
    %65 = vector.broadcast %cst_18 : f32 to vector<8x1xf32>
    %66 = arith.divf %64, %65 : vector<8x1xf32>
    %67 = vector.broadcast %59 : vector<8x1xf32> to vector<8x32xf32>
    %68 = arith.subf %55, %67 : vector<8x32xf32>
    %cst_19 = arith.constant 9.99999974E-6 : f32
    %69 = vector.broadcast %cst_19 : f32 to vector<8x1xf32>
    %70 = arith.addf %66, %69 : vector<8x1xf32>
    %71 = math.rsqrt %70 : vector<8x1xf32>
    %72 = vector.broadcast %71 : vector<8x1xf32> to vector<8x32xf32>
    %73 = arith.mulf %68, %72 : vector<8x32xf32>
    %74 = vector.broadcast %53 : vector<1x32xf32> to vector<8x32xf32>
    %75 = arith.mulf %73, %74 : vector<8x32xf32>
    %76 = vector.broadcast %54 : vector<1x32xf32> to vector<8x32xf32>
    %77 = arith.addf %75, %76 : vector<8x32xf32>
    %c32_20 = arith.constant 32 : index
    %c128 = arith.constant 128 : index
    %78 = vector.load %arg2[%c32_20, %c128] : memref<72x384xf32, #tpu.memory_space<vmem>>, vector<32x32xf32>
    %c65_21 = arith.constant 65 : index
    %c128_22 = arith.constant 128 : index
    %79 = vector.load %arg2[%c65_21, %c128_22] : memref<72x384xf32, #tpu.memory_space<vmem>>, vector<1x32xf32>
    %c32_23 = arith.constant 32 : index
    %c256 = arith.constant 256 : index
    %80 = vector.load %arg2[%c32_23, %c256] : memref<72x384xf32, #tpu.memory_space<vmem>>, vector<32x32xf32>
    %c65_24 = arith.constant 65 : index
    %c256_25 = arith.constant 256 : index
    %81 = vector.load %arg2[%c65_24, %c256_25] : memref<72x384xf32, #tpu.memory_space<vmem>>, vector<1x32xf32>
    %cst_26 = arith.constant dense<0.000000e+00> : vector<8x32xf32>
    %82 = tpu.matmul %77, %78, %cst_26 {dimension_numbers = #tpu.dot_dimension_numbers<[1], [0], [0], [1], [0, 0, 1, 1], [], []>} : vector<8x32xf32>, vector<32x32xf32>, vector<8x32xf32> -> vector<8x32xf32>
    %83 = vector.broadcast %79 : vector<1x32xf32> to vector<8x32xf32>
    %84 = arith.addf %82, %83 : vector<8x32xf32>
    %85 = arith.mulf %84, %84 : vector<8x32xf32>
    %86 = arith.mulf %84, %85 : vector<8x32xf32>
    %cst_27 = arith.constant 4.471500e-02 : f32
    %87 = vector.broadcast %cst_27 : f32 to vector<8x32xf32>
    %88 = arith.mulf %87, %86 : vector<8x32xf32>
    %89 = arith.addf %84, %88 : vector<8x32xf32>
    %cst_28 = arith.constant 0.797884583 : f32
    %90 = vector.broadcast %cst_28 : f32 to vector<8x32xf32>
    %91 = arith.mulf %90, %89 : vector<8x32xf32>
    %92 = math.tanh %91 : vector<8x32xf32>
    %cst_29 = arith.constant 1.000000e+00 : f32
    %93 = vector.broadcast %cst_29 : f32 to vector<8x32xf32>
    %94 = arith.addf %93, %92 : vector<8x32xf32>
    %cst_30 = arith.constant 5.000000e-01 : f32
    %95 = vector.broadcast %cst_30 : f32 to vector<8x32xf32>
    %96 = arith.mulf %95, %94 : vector<8x32xf32>
    %97 = arith.mulf %84, %96 : vector<8x32xf32>
    %cst_31 = arith.constant dense<0.000000e+00> : vector<8x32xf32>
    %98 = tpu.matmul %97, %80, %cst_31 {dimension_numbers = #tpu.dot_dimension_numbers<[1], [0], [0], [1], [0, 0, 1, 1], [], []>} : vector<8x32xf32>, vector<32x32xf32>, vector<8x32xf32> -> vector<8x32xf32>
    %99 = vector.broadcast %81 : vector<1x32xf32> to vector<8x32xf32>
    %100 = arith.addf %98, %99 : vector<8x32xf32>
    %c66_32 = arith.constant 66 : index
    %c128_33 = arith.constant 128 : index
    %101 = vector.load %arg2[%c66_32, %c128_33] : memref<72x384xf32, #tpu.memory_space<vmem>>, vector<1x32xf32>
    %c67_34 = arith.constant 67 : index
    %c128_35 = arith.constant 128 : index
    %102 = vector.load %arg2[%c67_34, %c128_35] : memref<72x384xf32, #tpu.memory_space<vmem>>, vector<1x32xf32>
    %cst_36 = arith.constant dense<0.000000e+00> : vector<8xf32>
    %103 = vector.multi_reduction <add>, %100, %cst_36 [1] : vector<8x32xf32> to vector<8xf32>
    %104 = vector.shape_cast %103 : vector<8xf32> to vector<8x1xf32>
    %cst_37 = arith.constant 3.200000e+01 : f32
    %105 = vector.broadcast %cst_37 : f32 to vector<8x1xf32>
    %106 = arith.divf %104, %105 : vector<8x1xf32>
    %107 = vector.broadcast %106 : vector<8x1xf32> to vector<8x32xf32>
    %108 = arith.subf %100, %107 : vector<8x32xf32>
    %109 = arith.mulf %108, %108 : vector<8x32xf32>
    %cst_38 = arith.constant dense<0.000000e+00> : vector<8xf32>
    %110 = vector.multi_reduction <add>, %109, %cst_38 [1] : vector<8x32xf32> to vector<8xf32>
    %111 = vector.shape_cast %110 : vector<8xf32> to vector<8x1xf32>
    %cst_39 = arith.constant 3.200000e+01 : f32
    %112 = vector.broadcast %cst_39 : f32 to vector<8x1xf32>
    %113 = arith.divf %111, %112 : vector<8x1xf32>
    %114 = vector.broadcast %106 : vector<8x1xf32> to vector<8x32xf32>
    %115 = arith.subf %100, %114 : vector<8x32xf32>
    %cst_40 = arith.constant 9.99999974E-6 : f32
    %116 = vector.broadcast %cst_40 : f32 to vector<8x1xf32>
    %117 = arith.addf %113, %116 : vector<8x1xf32>
    %118 = math.rsqrt %117 : vector<8x1xf32>
    %119 = vector.broadcast %118 : vector<8x1xf32> to vector<8x32xf32>
    %120 = arith.mulf %115, %119 : vector<8x32xf32>
    %121 = vector.broadcast %101 : vector<1x32xf32> to vector<8x32xf32>
    %122 = arith.mulf %120, %121 : vector<8x32xf32>
    %123 = vector.broadcast %102 : vector<1x32xf32> to vector<8x32xf32>
    %124 = arith.addf %122, %123 : vector<8x32xf32>
    %125 = vector.shape_cast %124 : vector<8x32xf32> to vector<1x8x32xf32>
    %c0_41 = arith.constant 0 : index
    %c0_42 = arith.constant 0 : index
    %c0_43 = arith.constant 0 : index
    %126 = vector.load %arg3[%c0_41, %c0_42, %c0_43] : memref<1x8x32xf32, #tpu.memory_space<vmem>>, vector<1x8x32xf32>
    tpu.vector_store %arg3[%c0_41, %c0_42, %c0_43], %125 {strides = array<i32>} : memref<1x8x32xf32, #tpu.memory_space<vmem>>, vector<1x8x32xf32>,
    return
  }
  func.func @transform_0(%arg0: i32) -> (i32, i32, i32) {
    %c0_i32 = arith.constant 0 : i32
    %c0_i32_0 = arith.constant 0 : i32
    %c0_i32_1 = arith.constant 0 : i32
    return %arg0, %c0_i32, %c0_i32_0 : i32, i32, i32
  }
  func.func @transform_1(%arg0: i32) -> (i32, i32) {
    %c0_i32 = arith.constant 0 : i32
    %c0_i32_0 = arith.constant 0 : i32
    %c0_i32_1 = arith.constant 0 : i32
    return %c0_i32, %c0_i32_0 : i32, i32
  }
  func.func @transform_2(%arg0: i32) -> (i32, i32, i32) {
    %c0_i32 = arith.constant 0 : i32
    %c0_i32_0 = arith.constant 0 : i32
    %c0_i32_1 = arith.constant 0 : i32
    return %arg0, %c0_i32, %c0_i32_0 : i32, i32, i32
  }
}

</mosaic_0001>

<llo_original>
// kernel: tpu_custom_call.1
$region0: #{tpu_custom_call.1}
  #allocation0 [shape = 'u32[]', space=smem, size = 0x4, offset = 0x4, fixed_abs, tag = 'smem constant byte address 0x4 - core index']
  #allocation1 [shape = 'u32[144,128]{1,0:T(1,128)}', space=vmem, size = 0x12000, scoped, tag = 'internal scratch']
  %s0 = inlined_call_operand.hbm [shape: f32[2,8,32], index: 0, kind: input, shape index: {}]
  %s1 = inlined_call_operand.hbm [shape: f32[72,384], index: 1, kind: input, shape index: {}]
  %s2 = inlined_call_operand.hbm [shape: f32[2,8,32], index: 2, kind: output, shape index: {}]
  %s3 = sld [smem:[#allocation0]]
  $region49: #{tpu_custom_call.1} parent=0
    _
  %s5 = ssub.s32 1, %s3
  %s6 = scalar_select 0, %s5, %s3
  $region1: #{tpu_custom_call.1} parent=0
    #allocation2 [shape = 'u8[8192]{0}', space=vmem, size = 0x2000, scoped, tag = 'input window, operand 0']
    #allocation3 [shape = 's32[2]{0}', space=sflag, size = 0x8, scoped, tag = 'scoped memory for tpu_custom_call.1']
    #allocation4 [shape = 's32[2]{0}', space=sflag, size = 0x8, scoped, tag = 'scoped memory for tpu_custom_call.1']
    #allocation5 [shape = 'u8[110592]{0}', space=vmem, size = 0x1b000, scoped, tag = 'input window, operand 1, single buffered']
    #allocation6 [shape = 's32[1]{0}', space=sflag, size = 0x4, scoped, tag = 'scoped memory for tpu_custom_call.1']
    #allocation7 [shape = 'u8[8192]{0}', space=vmem, size = 0x2000, scoped, tag = 'output window, operand 0']
    %7 = vsyncpa [#allocation3], 0
    %s8 = scalar_lea.sflag [#allocation3], 1
    %9 = vsyncpa %s8, 0
    %10 = vsyncpa [#allocation6], 0
    %11 = vsyncpa [#allocation4], 0
    %s12 = scalar_lea.sflag [#allocation4], 1
    %13 = vsyncpa %s12, 0
    loop: start=0, step=1, limit=4
    $region2: #{tpu_custom_call.1} parent=1 // loop_pre_header
      _
    $region3: #{tpu_custom_call.1} parent=1 // loop_header
      %s15 = sphi 0, %s19
      %p16 = scmp.ge.s32.totalorder %s15, 4
      %s25 = sphi 0, %s27
      %s28 = sphi 0, %s25
      %s29 = sphi 0, %s28
      %s45 = sphi 0, %s29
      %s49 = sphi 0, %s49
      %s51 = sphi 0, %s49
      %s52 = sphi 0, %s51
      %s66 = sphi 0, %s52
      %s72 = sphi 0, %s74
      %s75 = sphi 0, %s72
      %s76 = sphi 0, %s75
      %s92 = sphi 0, %s76
    $region4: #{tpu_custom_call.1} parent=1 // loop_header_branch
      %18 = sbr.rel (%p16) target = $region8
    $region5: #{tpu_custom_call.1} parent=1 // loop_body
      %s20 = ssub.s32 %s15, 1
      %s21 = ssub.s32 %s15, 2
      %s22 = sadd.s32 %s15, 1
      %s23 = ssub.s32 %s15, %s22
      %p24 = scmp.eq.s32.totalorder %s23, 0
      %s26 = sadd.s32 %s25, 1
      %s27 = scalar_select %p24, %s25, %s26
      %p30 = pneg %p24
      %p31 = scmp.eq.s32.totalorder %s15, 1
      %p32 = por %p30, %p31
      %p33 = scmp.ne.s32.totalorder %s25, %s28
      %p34 = scmp.eq.s32.totalorder %s15, 0
      %p35 = por %p33, %p34
      %p36 = scmp.ne.s32.totalorder %s25, %s28
      %p37 = scmp.eq.s32.totalorder %s20, 1
      %p38 = por %p36, %p37
      %p39 = scmp.ne.s32.totalorder %s28, %s29
      %p40 = scmp.eq.s32.totalorder %s20, 0
      %p41 = por %p39, %p40
      %p42 = scmp.ne.s32.totalorder %s28, %s29
      %p43 = scmp.eq.s32.totalorder %s21, 1
      %p44 = por %p42, %p43
      %p46 = scmp.ne.s32.totalorder %s29, %s45
      %p47 = scmp.eq.s32.totalorder %s21, 0
      %p48 = por %p46, %p47
      %s50 = sadd.s32 %s49, 1
      %p53 = scmp.eq.s32.totalorder %s15, 1
      %p54 = scmp.ne.s32.totalorder %s49, %s51
      %p55 = scmp.eq.s32.totalorder %s15, 0
      %p56 = por %p54, %p55
      %p57 = scmp.ne.s32.totalorder %s49, %s51
      %p58 = scmp.eq.s32.totalorder %s20, 1
      %p59 = por %p57, %p58
      %p60 = scmp.ne.s32.totalorder %s51, %s52
      %p61 = scmp.eq.s32.totalorder %s20, 0
      %p62 = por %p60, %p61
      %p63 = scmp.ne.s32.totalorder %s51, %s52
      %p64 = scmp.eq.s32.totalorder %s21, 1
      %p65 = por %p63, %p64
      %p67 = scmp.ne.s32.totalorder %s52, %s66
      %p68 = scmp.eq.s32.totalorder %s21, 0
      %p69 = por %p67, %p68
      %s70 = ssub.s32 %s15, %s22
      %p71 = scmp.eq.s32.totalorder %s70, 0
      %s73 = sadd.s32 %s72, 1
      %s74 = scalar_select %p71, %s72, %s73
      %p77 = pneg %p71
      %p78 = scmp.eq.s32.totalorder %s15, 1
      %p79 = por %p77, %p78
      %p80 = scmp.ne.s32.totalorder %s72, %s75
      %p81 = scmp.eq.s32.totalorder %s15, 0
      %p82 = por %p80, %p81
      %p83 = scmp.ne.s32.totalorder %s72, %s75
      %p84 = scmp.eq.s32.totalorder %s20, 1
      %p85 = por %p83, %p84
      %p86 = scmp.ne.s32.totalorder %s75, %s76
      %p87 = scmp.eq.s32.totalorder %s20, 0
      %p88 = por %p86, %p87
      %p89 = scmp.ne.s32.totalorder %s75, %s76
      %p90 = scmp.eq.s32.totalorder %s21, 1
      %p91 = por %p89, %p90
      %p93 = scmp.ne.s32.totalorder %s76, %s92
      %p94 = scmp.eq.s32.totalorder %s21, 0
      %p95 = por %p93, %p94
      %p96 = scmp.le.s32.totalorder 1, %s15
      %p97 = scmp.lt.s32.totalorder %s15, 3
      %p98 = pnand %p96, %p97
      %p99 = pneg %p98
      // Predicated region
      $region9: #{tpu_custom_call.1} parent=5 // pred_check
        _
      $region10: #{tpu_custom_call.1} parent=5 // pred_check_branch
        %101 = sbr.rel (%p98) target = $region12
      $region11: #{tpu_custom_call.1} parent=5 // pred_region
        %s102 = ssub.s32 %s15, 1
        // Predicated region
        $region13: #{tpu_custom_call.1} parent=11 // pred_check
          %p103 = pneg %p62
        $region14: #{tpu_custom_call.1} parent=11 // pred_check_branch
          %105 = sbr.rel (%p103) target = $region16
        $region15: #{tpu_custom_call.1} parent=11 // pred_region
          %s107 = ssub.s32 3456, 3456
          %108 = vsyncadd [#allocation6], %s107
          %s109 = sshll.u32 [#allocation5], 4
          %s110 = int_to_ptr.vmem [resolvable:$true] %s109
          %115 = dma.hbm_to_vmem [thread:$0]  %s1, 3456, %s110, [#allocation6], 384, 384, 24
        $region16: #{tpu_custom_call.1} parent=11 // pred_fallthru
          _
      $region12: #{tpu_custom_call.1} parent=5 // pred_fallthru
        _
      %p116 = scmp.lt.s32.totalorder %s15, 2
      // Predicated region
      $region17: #{tpu_custom_call.1} parent=5 // pred_check
        %p117 = pneg %p116
      $region18: #{tpu_custom_call.1} parent=5 // pred_check_branch
        %119 = sbr.rel (%p117) target = $region20
      $region19: #{tpu_custom_call.1} parent=5 // pred_region
        // Predicated region
        $region21: #{tpu_custom_call.1} parent=19 // pred_check
          %p120 = pneg %p35
        $region22: #{tpu_custom_call.1} parent=19 // pred_check_branch
          %122 = sbr.rel (%p120) target = $region24
        $region23: #{tpu_custom_call.1} parent=19 // pred_region
          %s123 = sand.u32 %s25, 1
          %s124 = scalar_lea.sflag [#allocation3], %s123
          %s125 = sand.u32 %s25, 1
          %s126 = smul.addr %s125, 8
          %s127 = scalar_lea.vmem [#allocation2], %s126
          %s129 = ssub.s32 128, 128
          %130 = vsyncadd %s124, %s129
          %s131 = smul.addr %s15, 128
          %s132 = scalar_lea.hbm %s0, %s131
          %s134 = sshll.u32 %s127, 4
          %s135 = int_to_ptr.vmem [resolvable:$true] %s134
          %137 = dma.hbm_to_vmem [thread:$0]  %s132, 128, %s135, %s124
        $region24: #{tpu_custom_call.1} parent=19 // pred_fallthru
          _
      $region20: #{tpu_custom_call.1} parent=5 // pred_fallthru
        _
      %p138 = scmp.le.s32.totalorder 1, %s15
      %p139 = scmp.lt.s32.totalorder %s15, 3
      %p140 = pnand %p138, %p139
      %p141 = pneg %p140
      // Predicated region
      $region25: #{tpu_custom_call.1} parent=5 // pred_check
        _
      $region26: #{tpu_custom_call.1} parent=5 // pred_check_branch
        %143 = sbr.rel (%p140) target = $region28
      $region27: #{tpu_custom_call.1} parent=5 // pred_region
        %s144 = ssub.s32 %s15, 1
        %s145 = sand.u32 %s28, 1
        %s146 = scalar_lea.sflag [#allocation3], %s145
        %s147 = sand.u32 %s28, 1
        %s148 = smul.addr %s147, 8
        %s149 = scalar_lea.vmem [#allocation2], %s148
        // Predicated region
        $region29: #{tpu_custom_call.1} parent=27 // pred_check
          %p150 = pneg %p41
        $region30: #{tpu_custom_call.1} parent=27 // pred_check_branch
          %152 = sbr.rel (%p150) target = $region32
        $region31: #{tpu_custom_call.1} parent=27 // pred_region
          %153 = dma.done %s146, 128
        $region32: #{tpu_custom_call.1} parent=27 // pred_fallthru
          _
        // Predicated region
        $region33: #{tpu_custom_call.1} parent=27 // pred_check
          %p154 = pneg %p62
        $region34: #{tpu_custom_call.1} parent=27 // pred_check_branch
          %156 = sbr.rel (%p154) target = $region36
        $region35: #{tpu_custom_call.1} parent=27 // pred_region
          %157 = dma.done [#allocation6], 3456
        $region36: #{tpu_custom_call.1} parent=27 // pred_fallthru
          _
        %s158 = sand.u32 %s28, 1
        %s159 = scalar_lea.sflag [#allocation3], %s158
        %s160 = sand.u32 %s28, 1
        %s161 = smul.addr %s160, 8
        %s162 = scalar_lea.vmem [#allocation2], %s161
        %p163 = pneg %p41
        %p164 = pneg %p38
        %p165 = pneg %p62
        %p166 = pneg %p59
        %p167 = pneg %p88
        %p168 = pneg %p85
        %s169 = sand.u32 %s75, 1
        %s170 = scalar_lea.sflag [#allocation4], %s169
        %s171 = sand.u32 %s75, 1
        %s172 = smul.addr %s171, 8
        %s173 = scalar_lea.vmem [#allocation7], %s172
        %v174 = vld [vmem:[%s149] sm:$0xff]
        %v175 = vld [vmem:[#allocation5] sm:$0xff]
        %v176 = vld [vmem:[#allocation5 + $0x8] sm:$0xff]
        %v177 = vld [vmem:[#allocation5 + $0x10] sm:$0xff]
        %v178 = vld [vmem:[#allocation5 + $0x18] sm:$0xff]
        %v179 = vld [vmem:[#allocation5 + $0x20] sm:$0xff]
        %v180 = vld [vmem:[#allocation5 + $0x28] sm:$0xff]
        %v181 = vld [vmem:[#allocation5 + $0x30] sm:$0xff]
        %v182 = vld [vmem:[#allocation5 + $0x38] sm:$0xff]
        %v183 = vld [vmem:[#allocation5 + $0x40] sm:$0xff]
        %v184 = vld [vmem:[#allocation5 + $0x48] sm:$0xff]
        %v185 = vld [vmem:[#allocation5 + $0x50] sm:$0xff]
        %v186 = vld [vmem:[#allocation5 + $0x58] sm:$0xff]
        %s187 = scalar_lea.vmem [#allocation5], 192
        %v188 = vld [vmem:[%s187] ss:$8 sm:$0x7]
        %v190 = vlaneseq
        %v191 = vshrl.u32 %v190, 7
        %v192 = vsub.s32 0, %v191
        %v193 = vrot.slane %v188, %v192
        %v194 = vlaneseq
        %v195 = vshrl.u32 %v194, 7
        %v196 = vsub.s32 1, %v195
        %v197 = vrot.slane %v188, %v196
        %v198 = vlaneseq
        %v199 = vshrl.u32 %v198, 7
        %v200 = vsub.s32 2, %v199
        %v201 = vrot.slane %v188, %v200
        %vm205 = vcmask 261120
        %v207 = vsel %vm205, %v174, 0
        %209 = vmatprep.subr.mxu0 %v176
        %210 = vmatpush1.msra.mxu0 %v175
        %211 = vmatprep.subr.mxu0 %v179
        %212 = vmatpush1.msra.mxu0 %v178
        %213 = vmatprep.subr.mxu0 %v182
        %214 = vmatpush1.msra.mxu0 %v181
        %215 = vmatprep.subr.mxu0 %v185
        %216 = vmatpush1.msra.mxu0 %v184
        %217 = vmatprep.subr.mxu0 0.0
        %218 = vmatpush1.msra.mxu0 0.0
        %219 = vmatprep.subr.mxu0 0.0
        %220 = vmatpush1.msra.mxu0 0.0
        %221 = vmatprep.subr.mxu0 0.0
        %222 = vmatpush1.msra.mxu0 0.0
        %223 = vmatprep.subr.mxu0 0.0
        %224 = vmatpush1.msra.mxu0 0.0
        %225 = vmatprep.subr.mxu0 0.0
        %226 = vmatpush1.msra.mxu0 0.0
        %227 = vmatprep.subr.mxu0 0.0
        %228 = vmatpush1.msra.mxu0 0.0
        %229 = vmatprep.subr.mxu0 0.0
        %230 = vmatpush1.msra.mxu0 0.0
        %231 = vmatprep.subr.mxu0 0.0
        %232 = vmatpush1.msra.mxu0 0.0
        %233 = vmatprep.subr.mxu0 0.0
        %234 = vmatpush1.msra.mxu0 0.0
        %235 = vmatprep.subr.mxu0 0.0
        %236 = vmatpush1.msra.mxu0 0.0
        %237 = vmatprep.subr.mxu0 0.0
        %238 = vmatpush1.msra.mxu0 0.0
        %239 = vmatprep.subr.mxu0 0.0
        %240 = vmatpush1.msra.mxu0 0.0
        %241 = vmatprep.subr.mxu0 0.0
        %242 = vmatpush1.msra.mxu0 0.0
        %243 = vmatprep.subr.mxu0 0.0
        %244 = vmatpush1.msra.mxu0 0.0
        %245 = vmatprep.subr.mxu0 0.0
        %246 = vmatpush1.msra.mxu0 0.0
        %247 = vmatprep.subr.mxu0 0.0
        %248 = vmatpush1.msra.mxu0 0.0
        %249 = vmatprep.subr.mxu0 0.0
        %250 = vmatpush1.msra.mxu0 0.0
        %251 = vmatprep.subr.mxu0 0.0
        %252 = vmatpush1.msra.mxu0 0.0
        %253 = vmatprep.subr.mxu0 0.0
        %254 = vmatpush1.msra.mxu0 0.0
        %255 = vmatprep.subr.mxu0 0.0
        %256 = vmatpush1.msra.mxu0 0.0
        %257 = vmatprep.subr.mxu0 0.0
        %258 = vmatpush1.msra.mxu0 0.0
        %259 = vmatprep.subr.mxu0 0.0
        %260 = vmatpush1.msra.mxu0 0.0
        %261 = vmatprep.subr.mxu0 0.0
        %262 = vmatpush1.msra.mxu0 0.0
        %263 = vmatprep.subr.mxu0 0.0
        %264 = vmatpush1.msra.mxu0 0.0
        %265 = vmatprep.subr.mxu0 0.0
        %266 = vmatpush1.msra.mxu0 0.0
        %267 = vmatprep.subr.mxu0 0.0
        %268 = vmatpush1.msra.mxu0 0.0
        %269 = vmatprep.subr.mxu0 0.0
        %270 = vmatpush1.msra.mxu0 0.0
        %271 = vmatprep.subr.mxu0 0.0
        %272 = vmatpush1.msra.mxu0 0.0
        %273 = vmatprep.mubr.f32.mxu0 0.0
        %274 = vmatmul.mubr.f32.gmra.mrb[0].mxu0 %v207
        %v275 = vpop.f32.mrb[0].mxu0
        %v276 = vadd.f32 %v193, %v275
        %v277 = vpop.f32.mrb[0].mxu0
        %v278 = vadd.f32 %v197, %v277
        %279 = vdwg.mxu0
        %280 = vmatprep.subr.mxu0 0.0
        %281 = vmatpush1.msra.mxu0 %v177
        %282 = vmatprep.subr.mxu0 0.0
        %283 = vmatpush1.msra.mxu0 %v180
        %284 = vmatprep.subr.mxu0 0.0
        %285 = vmatpush1.msra.mxu0 %v183
        %286 = vmatprep.subr.mxu0 0.0
        %287 = vmatpush1.msra.mxu0 %v186
        %288 = vmatprep.subr.mxu0 0.0
        %289 = vmatpush1.msra.mxu0 0.0
        %290 = vmatprep.subr.mxu0 0.0
        %291 = vmatpush1.msra.mxu0 0.0
        %292 = vmatprep.subr.mxu0 0.0
        %293 = vmatpush1.msra.mxu0 0.0
        %294 = vmatprep.subr.mxu0 0.0
        %295 = vmatpush1.msra.mxu0 0.0
        %296 = vmatprep.subr.mxu0 0.0
        %297 = vmatpush1.msra.mxu0 0.0
        %298 = vmatprep.subr.mxu0 0.0
        %299 = vmatpush1.msra.mxu0 0.0
        %300 = vmatprep.subr.mxu0 0.0
        %301 = vmatpush1.msra.mxu0 0.0
        %302 = vmatprep.subr.mxu0 0.0
        %303 = vmatpush1.msra.mxu0 0.0
        %304 = vmatprep.subr.mxu0 0.0
        %305 = vmatpush1.msra.mxu0 0.0
        %306 = vmatprep.subr.mxu0 0.0
        %307 = vmatpush1.msra.mxu0 0.0
        %308 = vmatprep.subr.mxu0 0.0
        %309 = vmatpush1.msra.mxu0 0.0
        %310 = vmatprep.subr.mxu0 0.0
        %311 = vmatpush1.msra.mxu0 0.0
        %312 = vmatprep.subr.mxu0 0.0
        %313 = vmatpush1.msra.mxu0 0.0
        %314 = vmatprep.subr.mxu0 0.0
        %315 = vmatpush1.msra.mxu0 0.0
        %316 = vmatprep.subr.mxu0 0.0
        %317 = vmatpush1.msra.mxu0 0.0
        %318 = vmatprep.subr.mxu0 0.0
        %319 = vmatpush1.msra.mxu0 0.0
        %320 = vmatprep.subr.mxu0 0.0
        %321 = vmatpush1.msra.mxu0 0.0
        %322 = vmatprep.subr.mxu0 0.0
        %323 = vmatpush1.msra.mxu0 0.0
        %324 = vmatprep.subr.mxu0 0.0
        %325 = vmatpush1.msra.mxu0 0.0
        %326 = vmatprep.subr.mxu0 0.0
        %327 = vmatpush1.msra.mxu0 0.0
        %328 = vmatprep.subr.mxu0 0.0
        %329 = vmatpush1.msra.mxu0 0.0
        %330 = vmatprep.subr.mxu0 0.0
        %331 = vmatpush1.msra.mxu0 0.0
        %332 = vmatprep.subr.mxu0 0.0
        %333 = vmatpush1.msra.mxu0 0.0
        %334 = vmatprep.subr.mxu0 0.0
        %335 = vmatpush1.msra.mxu0 0.0
        %336 = vmatprep.subr.mxu0 0.0
        %337 = vmatpush1.msra.mxu0 0.0
        %338 = vmatprep.subr.mxu0 0.0
        %339 = vmatpush1.msra.mxu0 0.0
        %340 = vmatprep.subr.mxu0 0.0
        %341 = vmatpush1.msra.mxu0 0.0
        %342 = vmatprep.subr.mxu0 0.0
        %343 = vmatpush1.msra.mxu0 0.0
        %344 = vmatprep.mubr.f32.mxu0 0.0
        %345 = vmatmul.mubr.f32.gmra.mrb[0].mxu0 %v207
        %v346 = vpop.f32.mrb[0].mxu0
        %v347 = vadd.f32 %v201, %v346
        %v348 = vpop.f32.mrb[0].mxu0
        %349 = vdwg.mxu0
        %351 = vrot.lane.b32.xlu0 %v276, 120
        %v352 = vpop.permute.xlu0 %351
        %353 = vrot.lane.b32.xlu0 %v276, 112
        %v354 = vpop.permute.xlu0 %353
        %355 = vrot.lane.b32.xlu0 %v276, 104
        %v356 = vpop.permute.xlu0 %355
        %358 = vrot.lane.b32.xlu0 %v278, 120
        %v359 = vpop.permute.xlu0 %358
        %360 = vrot.lane.b32.xlu0 %v278, 112
        %v361 = vpop.permute.xlu0 %360
        %362 = vrot.lane.b32.xlu0 %v278, 104
        %v363 = vpop.permute.xlu0 %362
        %365 = vrot.lane.b32.xlu0 %v347, 120
        %v366 = vpop.permute.xlu0 %365
        %368 = vrot.lane.b32.xlu0 %v347, 112
        %v369 = vpop.permute.xlu0 %368
        %371 = vrot.lane.b32.xlu0 %v347, 104
        %v372 = vpop.permute.xlu0 %371
        %vm374 = vcmask 64512
        %v375 = vsel %vm374, %v276, 0
        %v377 = vsel %vm374, %v278, 0
        %379 = vmatprep.subr.mxu0 0.0
        %380 = vmatpush1.xpose.msra.mxu0 %v377
        %381 = vmatprep.subr.mxu0 0.0
        %382 = vmatpush1.xpose.msra.mxu0 0.0
        %383 = vmatprep.subr.mxu0 0.0
        %384 = vmatpush1.xpose.msra.mxu0 0.0
        %385 = vmatprep.subr.mxu0 0.0
        %386 = vmatpush1.xpose.msra.mxu0 0.0
        %387 = vmatprep.subr.mxu0 0.0
        %388 = vmatpush1.xpose.msra.mxu0 0.0
        %389 = vmatprep.subr.mxu0 0.0
        %390 = vmatpush1.xpose.msra.mxu0 0.0
        %391 = vmatprep.subr.mxu0 0.0
        %392 = vmatpush1.xpose.msra.mxu0 0.0
        %393 = vmatprep.subr.mxu0 0.0
        %394 = vmatpush1.xpose.msra.mxu0 0.0
        %395 = vmatprep.subr.mxu0 0.0
        %396 = vmatpush1.xpose.msra.mxu0 0.0
        %397 = vmatprep.subr.mxu0 0.0
        %398 = vmatpush1.xpose.msra.mxu0 0.0
        %399 = vmatprep.subr.mxu0 0.0
        %400 = vmatpush1.xpose.msra.mxu0 0.0
        %401 = vmatprep.subr.mxu0 0.0
        %402 = vmatpush1.xpose.msra.mxu0 0.0
        %403 = vmatprep.subr.mxu0 0.0
        %404 = vmatpush1.xpose.msra.mxu0 0.0
        %405 = vmatprep.subr.mxu0 0.0
        %406 = vmatpush1.xpose.msra.mxu0 0.0
        %407 = vmatprep.subr.mxu0 0.0
        %408 = vmatpush1.xpose.msra.mxu0 0.0
        %409 = vmatprep.subr.mxu0 0.0
        %410 = vmatpush1.xpose.msra.mxu0 0.0
        %411 = vmatprep.subr.mxu0 0.0
        %412 = vmatpush1.xpose.msra.mxu0 0.0
        %413 = vmatprep.subr.mxu0 0.0
        %414 = vmatpush1.xpose.msra.mxu0 0.0
        %415 = vmatprep.subr.mxu0 0.0
        %416 = vmatpush1.xpose.msra.mxu0 0.0
        %417 = vmatprep.subr.mxu0 0.0
        %418 = vmatpush1.xpose.msra.mxu0 0.0
        %419 = vmatprep.subr.mxu0 0.0
        %420 = vmatpush1.xpose.msra.mxu0 0.0
        %421 = vmatprep.subr.mxu0 0.0
        %422 = vmatpush1.xpose.msra.mxu0 0.0
        %423 = vmatprep.subr.mxu0 0.0
        %424 = vmatpush1.xpose.msra.mxu0 0.0
        %425 = vmatprep.subr.mxu0 0.0
        %426 = vmatpush1.xpose.msra.mxu0 0.0
        %427 = vmatprep.subr.mxu0 0.0
        %428 = vmatpush1.xpose.msra.mxu0 0.0
        %429 = vmatprep.subr.mxu0 0.0
        %430 = vmatpush1.xpose.msra.mxu0 0.0
        %431 = vmatprep.subr.mxu0 0.0
        %432 = vmatpush1.xpose.msra.mxu0 0.0
        %433 = vmatprep.subr.mxu0 0.0
        %434 = vmatpush1.xpose.msra.mxu0 0.0
        %435 = vmatprep.subr.mxu0 0.0
        %436 = vmatpush1.xpose.msra.mxu0 0.0
        %437 = vmatprep.subr.mxu0 0.0
        %438 = vmatpush1.xpose.msra.mxu0 0.0
        %439 = vmatprep.subr.mxu0 0.0
        %440 = vmatpush1.xpose.msra.mxu0 0.0
        %441 = vmatprep.subr.mxu0 0.0
        %442 = vmatpush1.xpose.msra.mxu0 0.0
        %443 = vmatprep.mubr.f32.mxu0 0.0
        %444 = vmatmul.mubr.f32.gmra.mrb[0].mxu0 %v375
        %v445 = vpop.f32.mrb[0].mxu0
        %v446 = vadd.f32 0.0, %v445
        %v447 = vpop.f32.mrb[0].mxu0
        %448 = vdwg.mxu0
        %v449 = vsel %vm374, %v352, 0
        %v451 = vsel %vm374, %v359, 0
        %453 = vmatprep.subr.mxu0 0.0
        %454 = vmatpush1.xpose.msra.mxu0 %v451
        %455 = vmatprep.subr.mxu0 0.0
        %456 = vmatpush1.xpose.msra.mxu0 0.0
        %457 = vmatprep.subr.mxu0 0.0
        %458 = vmatpush1.xpose.msra.mxu0 0.0
        %459 = vmatprep.subr.mxu0 0.0
        %460 = vmatpush1.xpose.msra.mxu0 0.0
        %461 = vmatprep.subr.mxu0 0.0
        %462 = vmatpush1.xpose.msra.mxu0 0.0
        %463 = vmatprep.subr.mxu0 0.0
        %464 = vmatpush1.xpose.msra.mxu0 0.0
        %465 = vmatprep.subr.mxu0 0.0
        %466 = vmatpush1.xpose.msra.mxu0 0.0
        %467 = vmatprep.subr.mxu0 0.0
        %468 = vmatpush1.xpose.msra.mxu0 0.0
        %469 = vmatprep.subr.mxu0 0.0
        %470 = vmatpush1.xpose.msra.mxu0 0.0
        %471 = vmatprep.subr.mxu0 0.0
        %472 = vmatpush1.xpose.msra.mxu0 0.0
        %473 = vmatprep.subr.mxu0 0.0
        %474 = vmatpush1.xpose.msra.mxu0 0.0
        %475 = vmatprep.subr.mxu0 0.0
        %476 = vmatpush1.xpose.msra.mxu0 0.0
        %477 = vmatprep.subr.mxu0 0.0
        %478 = vmatpush1.xpose.msra.mxu0 0.0
        %479 = vmatprep.subr.mxu0 0.0
        %480 = vmatpush1.xpose.msra.mxu0 0.0
        %481 = vmatprep.subr.mxu0 0.0
        %482 = vmatpush1.xpose.msra.mxu0 0.0
        %483 = vmatprep.subr.mxu0 0.0
        %484 = vmatpush1.xpose.msra.mxu0 0.0
        %485 = vmatprep.subr.mxu0 0.0
        %486 = vmatpush1.xpose.msra.mxu0 0.0
        %487 = vmatprep.subr.mxu0 0.0
        %488 = vmatpush1.xpose.msra.mxu0 0.0
        %489 = vmatprep.subr.mxu0 0.0
        %490 = vmatpush1.xpose.msra.mxu0 0.0
        %491 = vmatprep.subr.mxu0 0.0
        %492 = vmatpush1.xpose.msra.mxu0 0.0
        %493 = vmatprep.subr.mxu0 0.0
        %494 = vmatpush1.xpose.msra.mxu0 0.0
        %495 = vmatprep.subr.mxu0 0.0
        %496 = vmatpush1.xpose.msra.mxu0 0.0
        %497 = vmatprep.subr.mxu0 0.0
        %498 = vmatpush1.xpose.msra.mxu0 0.0
        %499 = vmatprep.subr.mxu0 0.0
        %500 = vmatpush1.xpose.msra.mxu0 0.0
        %501 = vmatprep.subr.mxu0 0.0
        %502 = vmatpush1.xpose.msra.mxu0 0.0
        %503 = vmatprep.subr.mxu0 0.0
        %504 = vmatpush1.xpose.msra.mxu0 0.0
        %505 = vmatprep.subr.mxu0 0.0
        %506 = vmatpush1.xpose.msra.mxu0 0.0
        %507 = vmatprep.subr.mxu0 0.0
        %508 = vmatpush1.xpose.msra.mxu0 0.0
        %509 = vmatprep.subr.mxu0 0.0
        %510 = vmatpush1.xpose.msra.mxu0 0.0
        %511 = vmatprep.subr.mxu0 0.0
        %512 = vmatpush1.xpose.msra.mxu0 0.0
        %513 = vmatprep.subr.mxu0 0.0
        %514 = vmatpush1.xpose.msra.mxu0 0.0
        %515 = vmatprep.subr.mxu0 0.0
        %516 = vmatpush1.xpose.msra.mxu0 0.0
        %517 = vmatprep.mubr.f32.mxu0 0.0
        %518 = vmatmul.mubr.f32.gmra.mrb[0].mxu0 %v449
        %v519 = vpop.f32.mrb[0].mxu0
        %v520 = vadd.f32 0.0, %v519
        %v521 = vpop.f32.mrb[0].mxu0
        %522 = vdwg.mxu0
        %v523 = vsel %vm374, %v354, 0
        %v525 = vsel %vm374, %v361, 0
        %527 = vmatprep.subr.mxu0 0.0
        %528 = vmatpush1.xpose.msra.mxu0 %v525
        %529 = vmatprep.subr.mxu0 0.0
        %530 = vmatpush1.xpose.msra.mxu0 0.0
        %531 = vmatprep.subr.mxu0 0.0
        %532 = vmatpush1.xpose.msra.mxu0 0.0
        %533 = vmatprep.subr.mxu0 0.0
        %534 = vmatpush1.xpose.msra.mxu0 0.0
        %535 = vmatprep.subr.mxu0 0.0
        %536 = vmatpush1.xpose.msra.mxu0 0.0
        %537 = vmatprep.subr.mxu0 0.0
        %538 = vmatpush1.xpose.msra.mxu0 0.0
        %539 = vmatprep.subr.mxu0 0.0
        %540 = vmatpush1.xpose.msra.mxu0 0.0
        %541 = vmatprep.subr.mxu0 0.0
        %542 = vmatpush1.xpose.msra.mxu0 0.0
        %543 = vmatprep.subr.mxu0 0.0
        %544 = vmatpush1.xpose.msra.mxu0 0.0
        %545 = vmatprep.subr.mxu0 0.0
        %546 = vmatpush1.xpose.msra.mxu0 0.0
        %547 = vmatprep.subr.mxu0 0.0
        %548 = vmatpush1.xpose.msra.mxu0 0.0
        %549 = vmatprep.subr.mxu0 0.0
        %550 = vmatpush1.xpose.msra.mxu0 0.0
        %551 = vmatprep.subr.mxu0 0.0
        %552 = vmatpush1.xpose.msra.mxu0 0.0
        %553 = vmatprep.subr.mxu0 0.0
        %554 = vmatpush1.xpose.msra.mxu0 0.0
        %555 = vmatprep.subr.mxu0 0.0
        %556 = vmatpush1.xpose.msra.mxu0 0.0
        %557 = vmatprep.subr.mxu0 0.0
        %558 = vmatpush1.xpose.msra.mxu0 0.0
        %559 = vmatprep.subr.mxu0 0.0
        %560 = vmatpush1.xpose.msra.mxu0 0.0
        %561 = vmatprep.subr.mxu0 0.0
        %562 = vmatpush1.xpose.msra.mxu0 0.0
        %563 = vmatprep.subr.mxu0 0.0
        %564 = vmatpush1.xpose.msra.mxu0 0.0
        %565 = vmatprep.subr.mxu0 0.0
        %566 = vmatpush1.xpose.msra.mxu0 0.0
        %567 = vmatprep.subr.mxu0 0.0
        %568 = vmatpush1.xpose.msra.mxu0 0.0
        %569 = vmatprep.subr.mxu0 0.0
        %570 = vmatpush1.xpose.msra.mxu0 0.0
        %571 = vmatprep.subr.mxu0 0.0
        %572 = vmatpush1.xpose.msra.mxu0 0.0
        %573 = vmatprep.subr.mxu0 0.0
        %574 = vmatpush1.xpose.msra.mxu0 0.0
        %575 = vmatprep.subr.mxu0 0.0
        %576 = vmatpush1.xpose.msra.mxu0 0.0
        %577 = vmatprep.subr.mxu0 0.0
        %578 = vmatpush1.xpose.msra.mxu0 0.0
        %579 = vmatprep.subr.mxu0 0.0
        %580 = vmatpush1.xpose.msra.mxu0 0.0
        %581 = vmatprep.subr.mxu0 0.0
        %582 = vmatpush1.xpose.msra.mxu0 0.0
        %583 = vmatprep.subr.mxu0 0.0
        %584 = vmatpush1.xpose.msra.mxu0 0.0
        %585 = vmatprep.subr.mxu0 0.0
        %586 = vmatpush1.xpose.msra.mxu0 0.0
        %587 = vmatprep.subr.mxu0 0.0
        %588 = vmatpush1.xpose.msra.mxu0 0.0
        %589 = vmatprep.subr.mxu0 0.0
        %590 = vmatpush1.xpose.msra.mxu0 0.0
        %591 = vmatprep.mubr.f32.mxu0 0.0
        %592 = vmatmul.mubr.f32.gmra.mrb[0].mxu0 %v523
        %v593 = vpop.f32.mrb[0].mxu0
        %v594 = vadd.f32 0.0, %v593
        %v595 = vpop.f32.mrb[0].mxu0
        %596 = vdwg.mxu0
        %v597 = vsel %vm374, %v356, 0
        %v599 = vsel %vm374, %v363, 0
        %601 = vmatprep.subr.mxu0 0.0
        %602 = vmatpush1.xpose.msra.mxu0 %v599
        %603 = vmatprep.subr.mxu0 0.0
        %604 = vmatpush1.xpose.msra.mxu0 0.0
        %605 = vmatprep.subr.mxu0 0.0
        %606 = vmatpush1.xpose.msra.mxu0 0.0
        %607 = vmatprep.subr.mxu0 0.0
        %608 = vmatpush1.xpose.msra.mxu0 0.0
        %609 = vmatprep.subr.mxu0 0.0
        %610 = vmatpush1.xpose.msra.mxu0 0.0
        %611 = vmatprep.subr.mxu0 0.0
        %612 = vmatpush1.xpose.msra.mxu0 0.0
        %613 = vmatprep.subr.mxu0 0.0
        %614 = vmatpush1.xpose.msra.mxu0 0.0
        %615 = vmatprep.subr.mxu0 0.0
        %616 = vmatpush1.xpose.msra.mxu0 0.0
        %617 = vmatprep.subr.mxu0 0.0
        %618 = vmatpush1.xpose.msra.mxu0 0.0
        %619 = vmatprep.subr.mxu0 0.0
        %620 = vmatpush1.xpose.msra.mxu0 0.0
        %621 = vmatprep.subr.mxu0 0.0
        %622 = vmatpush1.xpose.msra.mxu0 0.0
        %623 = vmatprep.subr.mxu0 0.0
        %624 = vmatpush1.xpose.msra.mxu0 0.0
        %625 = vmatprep.subr.mxu0 0.0
        %626 = vmatpush1.xpose.msra.mxu0 0.0
        %627 = vmatprep.subr.mxu0 0.0
        %628 = vmatpush1.xpose.msra.mxu0 0.0
        %629 = vmatprep.subr.mxu0 0.0
        %630 = vmatpush1.xpose.msra.mxu0 0.0
        %631 = vmatprep.subr.mxu0 0.0
        %632 = vmatpush1.xpose.msra.mxu0 0.0
        %633 = vmatprep.subr.mxu0 0.0
        %634 = vmatpush1.xpose.msra.mxu0 0.0
        %635 = vmatprep.subr.mxu0 0.0
        %636 = vmatpush1.xpose.msra.mxu0 0.0
        %637 = vmatprep.subr.mxu0 0.0
        %638 = vmatpush1.xpose.msra.mxu0 0.0
        %639 = vmatprep.subr.mxu0 0.0
        %640 = vmatpush1.xpose.msra.mxu0 0.0
        %641 = vmatprep.subr.mxu0 0.0
        %642 = vmatpush1.xpose.msra.mxu0 0.0
        %643 = vmatprep.subr.mxu0 0.0
        %644 = vmatpush1.xpose.msra.mxu0 0.0
        %645 = vmatprep.subr.mxu0 0.0
        %646 = vmatpush1.xpose.msra.mxu0 0.0
        %647 = vmatprep.subr.mxu0 0.0
        %648 = vmatpush1.xpose.msra.mxu0 0.0
        %649 = vmatprep.subr.mxu0 0.0
        %650 = vmatpush1.xpose.msra.mxu0 0.0
        %651 = vmatprep.subr.mxu0 0.0
        %652 = vmatpush1.xpose.msra.mxu0 0.0
        %653 = vmatprep.subr.mxu0 0.0
        %654 = vmatpush1.xpose.msra.mxu0 0.0
        %655 = vmatprep.subr.mxu0 0.0
        %656 = vmatpush1.xpose.msra.mxu0 0.0
        %657 = vmatprep.subr.mxu0 0.0
        %658 = vmatpush1.xpose.msra.mxu0 0.0
        %659 = vmatprep.subr.mxu0 0.0
        %660 = vmatpush1.xpose.msra.mxu0 0.0
        %661 = vmatprep.subr.mxu0 0.0
        %662 = vmatpush1.xpose.msra.mxu0 0.0
        %663 = vmatprep.subr.mxu0 0.0
        %664 = vmatpush1.xpose.msra.mxu0 0.0
        %665 = vmatprep.mubr.f32.mxu0 0.0
        %666 = vmatmul.mubr.f32.gmra.mrb[0].mxu0 %v597
        %v667 = vpop.f32.mrb[0].mxu0
        %v668 = vadd.f32 0.0, %v667
        %v669 = vpop.f32.mrb[0].mxu0
        %670 = vdwg.mxu0
        %v671 = vsel %vm374, %v446, -inf
        %672 = vmax.xlane.f32.xlu0 %v671
        %v673 = vpop.xlane.xlu0 %672
        %v674 = vsel %vm374, %v520, -inf
        %675 = vmax.xlane.f32.xlu0 %v674
        %v676 = vpop.xlane.xlu0 %675
        %v677 = vsel %vm374, %v594, -inf
        %678 = vmax.xlane.f32.xlu0 %v677
        %v679 = vpop.xlane.xlu0 %678
        %v680 = vsel %vm374, %v668, -inf
        %681 = vmax.xlane.f32.xlu0 %v680
        %v682 = vpop.xlane.xlu0 %681
        %v683 = vsub.f32 %v446, %v673
        %v684 = vsub.f32 %v520, %v676
        %v685 = vsub.f32 %v594, %v679
        %v686 = vsub.f32 %v668, %v682
        %v687 = vmul.f32 %v683, 1.442695
        %v688 = vpow.pop %v687
        %v689 = vmul.f32 %v684, 1.442695
        %v690 = vpow.pop %v689
        %v691 = vmul.f32 %v685, 1.442695
        %v692 = vpow.pop %v691
        %v693 = vmul.f32 %v686, 1.442695
        %v694 = vpow.pop %v693
        %v695 = vsel %vm374, %v688, 0.0
        %696 = vadd.xlane.f32.xlu0 %v695
        %v697 = vpop.xlane.xlu0 %696
        %v698 = vsel %vm374, %v690, 0.0
        %699 = vadd.xlane.f32.xlu0 %v698
        %v700 = vpop.xlane.xlu0 %699
        %v701 = vsel %vm374, %v692, 0.0
        %702 = vadd.xlane.f32.xlu0 %v701
        %v703 = vpop.xlane.xlu0 %702
        %v704 = vsel %vm374, %v694, 0.0
        %705 = vadd.xlane.f32.xlu0 %v704
        %v706 = vpop.xlane.xlu0 %705
        %v707 = vrcp.pop %v697
        %v708 = vrcp.pop %v700
        %v709 = vrcp.pop %v703
        %v710 = vrcp.pop %v706
        %v711 = vmul.f32 %v688, %v707
        %v712 = vmul.f32 %v690, %v708
        %v713 = vmul.f32 %v692, %v709
        %v714 = vmul.f32 %v694, %v710
        %v716 = vsel %vm374, %v711, 0
        %718 = vmatprep.subr.mxu0 0.0
        %719 = vmatpush1.msra.mxu0 %v347
        %720 = vmatprep.subr.mxu0 0.0
        %721 = vmatpush1.msra.mxu0 0.0
        %722 = vmatprep.subr.mxu0 0.0
        %723 = vmatpush1.msra.mxu0 0.0
        %724 = vmatprep.subr.mxu0 0.0
        %725 = vmatpush1.msra.mxu0 0.0
        %726 = vmatprep.subr.mxu0 0.0
        %727 = vmatpush1.msra.mxu0 0.0
        %728 = vmatprep.subr.mxu0 0.0
        %729 = vmatpush1.msra.mxu0 0.0
        %730 = vmatprep.subr.mxu0 0.0
        %731 = vmatpush1.msra.mxu0 0.0
        %732 = vmatprep.subr.mxu0 0.0
        %733 = vmatpush1.msra.mxu0 0.0
        %734 = vmatprep.subr.mxu0 0.0
        %735 = vmatpush1.msra.mxu0 0.0
        %736 = vmatprep.subr.mxu0 0.0
        %737 = vmatpush1.msra.mxu0 0.0
        %738 = vmatprep.subr.mxu0 0.0
        %739 = vmatpush1.msra.mxu0 0.0
        %740 = vmatprep.subr.mxu0 0.0
        %741 = vmatpush1.msra.mxu0 0.0
        %742 = vmatprep.subr.mxu0 0.0
        %743 = vmatpush1.msra.mxu0 0.0
        %744 = vmatprep.subr.mxu0 0.0
        %745 = vmatpush1.msra.mxu0 0.0
        %746 = vmatprep.subr.mxu0 0.0
        %747 = vmatpush1.msra.mxu0 0.0
        %748 = vmatprep.subr.mxu0 0.0
        %749 = vmatpush1.msra.mxu0 0.0
        %750 = vmatprep.subr.mxu0 0.0
        %751 = vmatpush1.msra.mxu0 0.0
        %752 = vmatprep.subr.mxu0 0.0
        %753 = vmatpush1.msra.mxu0 0.0
        %754 = vmatprep.subr.mxu0 0.0
        %755 = vmatpush1.msra.mxu0 0.0
        %756 = vmatprep.subr.mxu0 0.0
        %757 = vmatpush1.msra.mxu0 0.0
        %758 = vmatprep.subr.mxu0 0.0
        %759 = vmatpush1.msra.mxu0 0.0
        %760 = vmatprep.subr.mxu0 0.0
        %761 = vmatpush1.msra.mxu0 0.0
        %762 = vmatprep.subr.mxu0 0.0
        %763 = vmatpush1.msra.mxu0 0.0
        %764 = vmatprep.subr.mxu0 0.0
        %765 = vmatpush1.msra.mxu0 0.0
        %766 = vmatprep.subr.mxu0 0.0
        %767 = vmatpush1.msra.mxu0 0.0
        %768 = vmatprep.subr.mxu0 0.0
        %769 = vmatpush1.msra.mxu0 0.0
        %770 = vmatprep.subr.mxu0 0.0
        %771 = vmatpush1.msra.mxu0 0.0
        %772 = vmatprep.subr.mxu0 0.0
        %773 = vmatpush1.msra.mxu0 0.0
        %774 = vmatprep.subr.mxu0 0.0
        %775 = vmatpush1.msra.mxu0 0.0
        %776 = vmatprep.subr.mxu0 0.0
        %777 = vmatpush1.msra.mxu0 0.0
        %778 = vmatprep.subr.mxu0 0.0
        %779 = vmatpush1.msra.mxu0 0.0
        %780 = vmatprep.subr.mxu0 0.0
        %781 = vmatpush1.msra.mxu0 0.0
        %782 = vmatprep.mubr.f32.mxu0 0.0
        %783 = vmatmul.mubr.f32.gmra.mrb[0].mxu0 %v716
        %v784 = vpop.f32.mrb[0].mxu0
        %v785 = vadd.f32 0.0, %v784
        %v786 = vpop.f32.mrb[0].mxu0
        %787 = vdwg.mxu0
        %v789 = vsel %vm374, %v712, 0
        %791 = vmatprep.subr.mxu0 0.0
        %792 = vmatpush1.msra.mxu0 %v366
        %793 = vmatprep.subr.mxu0 0.0
        %794 = vmatpush1.msra.mxu0 0.0
        %795 = vmatprep.subr.mxu0 0.0
        %796 = vmatpush1.msra.mxu0 0.0
        %797 = vmatprep.subr.mxu0 0.0
        %798 = vmatpush1.msra.mxu0 0.0
        %799 = vmatprep.subr.mxu0 0.0
        %800 = vmatpush1.msra.mxu0 0.0
        %801 = vmatprep.subr.mxu0 0.0
        %802 = vmatpush1.msra.mxu0 0.0
        %803 = vmatprep.subr.mxu0 0.0
        %804 = vmatpush1.msra.mxu0 0.0
        %805 = vmatprep.subr.mxu0 0.0
        %806 = vmatpush1.msra.mxu0 0.0
        %807 = vmatprep.subr.mxu0 0.0
        %808 = vmatpush1.msra.mxu0 0.0
        %809 = vmatprep.subr.mxu0 0.0
        %810 = vmatpush1.msra.mxu0 0.0
        %811 = vmatprep.subr.mxu0 0.0
        %812 = vmatpush1.msra.mxu0 0.0
        %813 = vmatprep.subr.mxu0 0.0
        %814 = vmatpush1.msra.mxu0 0.0
        %815 = vmatprep.subr.mxu0 0.0
        %816 = vmatpush1.msra.mxu0 0.0
        %817 = vmatprep.subr.mxu0 0.0
        %818 = vmatpush1.msra.mxu0 0.0
        %819 = vmatprep.subr.mxu0 0.0
        %820 = vmatpush1.msra.mxu0 0.0
        %821 = vmatprep.subr.mxu0 0.0
        %822 = vmatpush1.msra.mxu0 0.0
        %823 = vmatprep.subr.mxu0 0.0
        %824 = vmatpush1.msra.mxu0 0.0
        %825 = vmatprep.subr.mxu0 0.0
        %826 = vmatpush1.msra.mxu0 0.0
        %827 = vmatprep.subr.mxu0 0.0
        %828 = vmatpush1.msra.mxu0 0.0
        %829 = vmatprep.subr.mxu0 0.0
        %830 = vmatpush1.msra.mxu0 0.0
        %831 = vmatprep.subr.mxu0 0.0
        %832 = vmatpush1.msra.mxu0 0.0
        %833 = vmatprep.subr.mxu0 0.0
        %834 = vmatpush1.msra.mxu0 0.0
        %835 = vmatprep.subr.mxu0 0.0
        %836 = vmatpush1.msra.mxu0 0.0
        %837 = vmatprep.subr.mxu0 0.0
        %838 = vmatpush1.msra.mxu0 0.0
        %839 = vmatprep.subr.mxu0 0.0
        %840 = vmatpush1.msra.mxu0 0.0
        %841 = vmatprep.subr.mxu0 0.0
        %842 = vmatpush1.msra.mxu0 0.0
        %843 = vmatprep.subr.mxu0 0.0
        %844 = vmatpush1.msra.mxu0 0.0
        %845 = vmatprep.subr.mxu0 0.0
        %846 = vmatpush1.msra.mxu0 0.0
        %847 = vmatprep.subr.mxu0 0.0
        %848 = vmatpush1.msra.mxu0 0.0
        %849 = vmatprep.subr.mxu0 0.0
        %850 = vmatpush1.msra.mxu0 0.0
        %851 = vmatprep.subr.mxu0 0.0
        %852 = vmatpush1.msra.mxu0 0.0
        %853 = vmatprep.subr.mxu0 0.0
        %854 = vmatpush1.msra.mxu0 0.0
        %855 = vmatprep.mubr.f32.mxu0 0.0
        %856 = vmatmul.mubr.f32.gmra.mrb[0].mxu0 %v789
        %v857 = vpop.f32.mrb[0].mxu0
        %v858 = vadd.f32 0.0, %v857
        %v859 = vpop.f32.mrb[0].mxu0
        %860 = vdwg.mxu0
        %v862 = vsel %vm374, %v713, 0
        %864 = vmatprep.subr.mxu0 0.0
        %865 = vmatpush1.msra.mxu0 %v369
        %866 = vmatprep.subr.mxu0 0.0
        %867 = vmatpush1.msra.mxu0 0.0
        %868 = vmatprep.subr.mxu0 0.0
        %869 = vmatpush1.msra.mxu0 0.0
        %870 = vmatprep.subr.mxu0 0.0
        %871 = vmatpush1.msra.mxu0 0.0
        %872 = vmatprep.subr.mxu0 0.0
        %873 = vmatpush1.msra.mxu0 0.0
        %874 = vmatprep.subr.mxu0 0.0
        %875 = vmatpush1.msra.mxu0 0.0
        %876 = vmatprep.subr.mxu0 0.0
        %877 = vmatpush1.msra.mxu0 0.0
        %878 = vmatprep.subr.mxu0 0.0
        %879 = vmatpush1.msra.mxu0 0.0
        %880 = vmatprep.subr.mxu0 0.0
        %881 = vmatpush1.msra.mxu0 0.0
        %882 = vmatprep.subr.mxu0 0.0
        %883 = vmatpush1.msra.mxu0 0.0
        %884 = vmatprep.subr.mxu0 0.0
        %885 = vmatpush1.msra.mxu0 0.0
        %886 = vmatprep.subr.mxu0 0.0
        %887 = vmatpush1.msra.mxu0 0.0
        %888 = vmatprep.subr.mxu0 0.0
        %889 = vmatpush1.msra.mxu0 0.0
        %890 = vmatprep.subr.mxu0 0.0
        %891 = vmatpush1.msra.mxu0 0.0
        %892 = vmatprep.subr.mxu0 0.0
        %893 = vmatpush1.msra.mxu0 0.0
        %894 = vmatprep.subr.mxu0 0.0
        %895 = vmatpush1.msra.mxu0 0.0
        %896 = vmatprep.subr.mxu0 0.0
        %897 = vmatpush1.msra.mxu0 0.0
        %898 = vmatprep.subr.mxu0 0.0
        %899 = vmatpush1.msra.mxu0 0.0
        %900 = vmatprep.subr.mxu0 0.0
        %901 = vmatpush1.msra.mxu0 0.0
        %902 = vmatprep.subr.mxu0 0.0
        %903 = vmatpush1.msra.mxu0 0.0
        %904 = vmatprep.subr.mxu0 0.0
        %905 = vmatpush1.msra.mxu0 0.0
        %906 = vmatprep.subr.mxu0 0.0
        %907 = vmatpush1.msra.mxu0 0.0
        %908 = vmatprep.subr.mxu0 0.0
        %909 = vmatpush1.msra.mxu0 0.0
        %910 = vmatprep.subr.mxu0 0.0
        %911 = vmatpush1.msra.mxu0 0.0
        %912 = vmatprep.subr.mxu0 0.0
        %913 = vmatpush1.msra.mxu0 0.0
        %914 = vmatprep.subr.mxu0 0.0
        %915 = vmatpush1.msra.mxu0 0.0
        %916 = vmatprep.subr.mxu0 0.0
        %917 = vmatpush1.msra.mxu0 0.0
        %918 = vmatprep.subr.mxu0 0.0
        %919 = vmatpush1.msra.mxu0 0.0
        %920 = vmatprep.subr.mxu0 0.0
        %921 = vmatpush1.msra.mxu0 0.0
        %922 = vmatprep.subr.mxu0 0.0
        %923 = vmatpush1.msra.mxu0 0.0
        %924 = vmatprep.subr.mxu0 0.0
        %925 = vmatpush1.msra.mxu0 0.0
        %926 = vmatprep.subr.mxu0 0.0
        %927 = vmatpush1.msra.mxu0 0.0
        %928 = vmatprep.mubr.f32.mxu0 0.0
        %929 = vmatmul.mubr.f32.gmra.mrb[0].mxu0 %v862
        %v930 = vpop.f32.mrb[0].mxu0
        %v931 = vadd.f32 0.0, %v930
        %v932 = vpop.f32.mrb[0].mxu0
        %933 = vdwg.mxu0
        %v935 = vsel %vm374, %v714, 0
        %937 = vmatprep.subr.mxu0 0.0
        %938 = vmatpush1.msra.mxu0 %v372
        %939 = vmatprep.subr.mxu0 0.0
        %940 = vmatpush1.msra.mxu0 0.0
        %941 = vmatprep.subr.mxu0 0.0
        %942 = vmatpush1.msra.mxu0 0.0
        %943 = vmatprep.subr.mxu0 0.0
        %944 = vmatpush1.msra.mxu0 0.0
        %945 = vmatprep.subr.mxu0 0.0
        %946 = vmatpush1.msra.mxu0 0.0
        %947 = vmatprep.subr.mxu0 0.0
        %948 = vmatpush1.msra.mxu0 0.0
        %949 = vmatprep.subr.mxu0 0.0
        %950 = vmatpush1.msra.mxu0 0.0
        %951 = vmatprep.subr.mxu0 0.0
        %952 = vmatpush1.msra.mxu0 0.0
        %953 = vmatprep.subr.mxu0 0.0
        %954 = vmatpush1.msra.mxu0 0.0
        %955 = vmatprep.subr.mxu0 0.0
        %956 = vmatpush1.msra.mxu0 0.0
        %957 = vmatprep.subr.mxu0 0.0
        %958 = vmatpush1.msra.mxu0 0.0
        %959 = vmatprep.subr.mxu0 0.0
        %960 = vmatpush1.msra.mxu0 0.0
        %961 = vmatprep.subr.mxu0 0.0
        %962 = vmatpush1.msra.mxu0 0.0
        %963 = vmatprep.subr.mxu0 0.0
        %964 = vmatpush1.msra.mxu0 0.0
        %965 = vmatprep.subr.mxu0 0.0
        %966 = vmatpush1.msra.mxu0 0.0
        %967 = vmatprep.subr.mxu0 0.0
        %968 = vmatpush1.msra.mxu0 0.0
        %969 = vmatprep.subr.mxu0 0.0
        %970 = vmatpush1.msra.mxu0 0.0
        %971 = vmatprep.subr.mxu0 0.0
        %972 = vmatpush1.msra.mxu0 0.0
        %973 = vmatprep.subr.mxu0 0.0
        %974 = vmatpush1.msra.mxu0 0.0
        %975 = vmatprep.subr.mxu0 0.0
        %976 = vmatpush1.msra.mxu0 0.0
        %977 = vmatprep.subr.mxu0 0.0
        %978 = vmatpush1.msra.mxu0 0.0
        %979 = vmatprep.subr.mxu0 0.0
        %980 = vmatpush1.msra.mxu0 0.0
        %981 = vmatprep.subr.mxu0 0.0
        %982 = vmatpush1.msra.mxu0 0.0
        %983 = vmatprep.subr.mxu0 0.0
        %984 = vmatpush1.msra.mxu0 0.0
        %985 = vmatprep.subr.mxu0 0.0
        %986 = vmatpush1.msra.mxu0 0.0
        %987 = vmatprep.subr.mxu0 0.0
        %988 = vmatpush1.msra.mxu0 0.0
        %989 = vmatprep.subr.mxu0 0.0
        %990 = vmatpush1.msra.mxu0 0.0
        %991 = vmatprep.subr.mxu0 0.0
        %992 = vmatpush1.msra.mxu0 0.0
        %993 = vmatprep.subr.mxu0 0.0
        %994 = vmatpush1.msra.mxu0 0.0
        %995 = vmatprep.subr.mxu0 0.0
        %996 = vmatpush1.msra.mxu0 0.0
        %997 = vmatprep.subr.mxu0 0.0
        %998 = vmatpush1.msra.mxu0 0.0
        %999 = vmatprep.subr.mxu0 0.0
        %1000 = vmatpush1.msra.mxu0 0.0
        %1001 = vmatprep.mubr.f32.mxu0 0.0
        %1002 = vmatmul.mubr.f32.gmra.mrb[0].mxu0 %v935
        %v1003 = vpop.f32.mrb[0].mxu0
        %v1004 = vadd.f32 0.0, %v1003
        %v1005 = vpop.f32.mrb[0].mxu0
        %1006 = vdwg.mxu0
        %v1007 = vld [vmem:[#allocation5 + $0x60] sm:$0xff]
        %v1008 = vld [vmem:[#allocation5 + $0x78] sm:$0xff]
        %v1009 = vld [vmem:[#allocation5 + $0x90] sm:$0xff]
        %v1010 = vld [vmem:[#allocation5 + $0xa8] sm:$0xff]
        %v1011 = vld [vmem:[#allocation5 + $0xc1] ss:$0 sm:$0xff]
        %v1013 = vsel %vm374, %v785, 0
        %1015 = vmatprep.subr.mxu0 0.0
        %1016 = vmatpush1.msra.mxu0 %v1007
        %1017 = vmatprep.subr.mxu0 0.0
        %1018 = vmatpush1.msra.mxu0 0.0
        %1019 = vmatprep.subr.mxu0 0.0
        %1020 = vmatpush1.msra.mxu0 0.0
        %1021 = vmatprep.subr.mxu0 0.0
        %1022 = vmatpush1.msra.mxu0 0.0
        %1023 = vmatprep.subr.mxu0 0.0
        %1024 = vmatpush1.msra.mxu0 0.0
        %1025 = vmatprep.subr.mxu0 0.0
        %1026 = vmatpush1.msra.mxu0 0.0
        %1027 = vmatprep.subr.mxu0 0.0
        %1028 = vmatpush1.msra.mxu0 0.0
        %1029 = vmatprep.subr.mxu0 0.0
        %1030 = vmatpush1.msra.mxu0 0.0
        %1031 = vmatprep.subr.mxu0 0.0
        %1032 = vmatpush1.msra.mxu0 0.0
        %1033 = vmatprep.subr.mxu0 0.0
        %1034 = vmatpush1.msra.mxu0 0.0
        %1035 = vmatprep.subr.mxu0 0.0
        %1036 = vmatpush1.msra.mxu0 0.0
        %1037 = vmatprep.subr.mxu0 0.0
        %1038 = vmatpush1.msra.mxu0 0.0
        %1039 = vmatprep.subr.mxu0 0.0
        %1040 = vmatpush1.msra.mxu0 0.0
        %1041 = vmatprep.subr.mxu0 0.0
        %1042 = vmatpush1.msra.mxu0 0.0
        %1043 = vmatprep.subr.mxu0 0.0
        %1044 = vmatpush1.msra.mxu0 0.0
        %1045 = vmatprep.subr.mxu0 0.0
        %1046 = vmatpush1.msra.mxu0 0.0
        %1047 = vmatprep.subr.mxu0 0.0
        %1048 = vmatpush1.msra.mxu0 0.0
        %1049 = vmatprep.subr.mxu0 0.0
        %1050 = vmatpush1.msra.mxu0 0.0
        %1051 = vmatprep.subr.mxu0 0.0
        %1052 = vmatpush1.msra.mxu0 0.0
        %1053 = vmatprep.subr.mxu0 0.0
        %1054 = vmatpush1.msra.mxu0 0.0
        %1055 = vmatprep.subr.mxu0 0.0
        %1056 = vmatpush1.msra.mxu0 0.0
        %1057 = vmatprep.subr.mxu0 0.0
        %1058 = vmatpush1.msra.mxu0 0.0
        %1059 = vmatprep.subr.mxu0 0.0
        %1060 = vmatpush1.msra.mxu0 0.0
        %1061 = vmatprep.subr.mxu0 0.0
        %1062 = vmatpush1.msra.mxu0 0.0
        %1063 = vmatprep.subr.mxu0 0.0
        %1064 = vmatpush1.msra.mxu0 0.0
        %1065 = vmatprep.subr.mxu0 0.0
        %1066 = vmatpush1.msra.mxu0 0.0
        %1067 = vmatprep.subr.mxu0 0.0
        %1068 = vmatpush1.msra.mxu0 0.0
        %1069 = vmatprep.subr.mxu0 0.0
        %1070 = vmatpush1.msra.mxu0 0.0
        %1071 = vmatprep.subr.mxu0 0.0
        %1072 = vmatpush1.msra.mxu0 0.0
        %1073 = vmatprep.subr.mxu0 0.0
        %1074 = vmatpush1.msra.mxu0 0.0
        %1075 = vmatprep.subr.mxu0 0.0
        %1076 = vmatpush1.msra.mxu0 0.0
        %1077 = vmatprep.subr.mxu0 0.0
        %1078 = vmatpush1.msra.mxu0 0.0
        %1079 = vmatprep.mubr.f32.mxu0 0.0
        %1080 = vmatmul.mubr.f32.gmra.mrb[0].mxu0 %v1013
        %v1081 = vpop.f32.mrb[0].mxu0
        %v1082 = vadd.f32 0.0, %v1081
        %v1083 = vpop.f32.mrb[0].mxu0
        %1084 = vdwg.mxu0
        %v1086 = vsel %vm374, %v858, 0
        %1088 = vmatprep.subr.mxu0 0.0
        %1089 = vmatpush1.msra.mxu0 %v1008
        %1090 = vmatprep.subr.mxu0 0.0
        %1091 = vmatpush1.msra.mxu0 0.0
        %1092 = vmatprep.subr.mxu0 0.0
        %1093 = vmatpush1.msra.mxu0 0.0
        %1094 = vmatprep.subr.mxu0 0.0
        %1095 = vmatpush1.msra.mxu0 0.0
        %1096 = vmatprep.subr.mxu0 0.0
        %1097 = vmatpush1.msra.mxu0 0.0
        %1098 = vmatprep.subr.mxu0 0.0
        %1099 = vmatpush1.msra.mxu0 0.0
        %1100 = vmatprep.subr.mxu0 0.0
        %1101 = vmatpush1.msra.mxu0 0.0
        %1102 = vmatprep.subr.mxu0 0.0
        %1103 = vmatpush1.msra.mxu0 0.0
        %1104 = vmatprep.subr.mxu0 0.0
        %1105 = vmatpush1.msra.mxu0 0.0
        %1106 = vmatprep.subr.mxu0 0.0
        %1107 = vmatpush1.msra.mxu0 0.0
        %1108 = vmatprep.subr.mxu0 0.0
        %1109 = vmatpush1.msra.mxu0 0.0
        %1110 = vmatprep.subr.mxu0 0.0
        %1111 = vmatpush1.msra.mxu0 0.0
        %1112 = vmatprep.subr.mxu0 0.0
        %1113 = vmatpush1.msra.mxu0 0.0
        %1114 = vmatprep.subr.mxu0 0.0
        %1115 = vmatpush1.msra.mxu0 0.0
        %1116 = vmatprep.subr.mxu0 0.0
        %1117 = vmatpush1.msra.mxu0 0.0
        %1118 = vmatprep.subr.mxu0 0.0
        %1119 = vmatpush1.msra.mxu0 0.0
        %1120 = vmatprep.subr.mxu0 0.0
        %1121 = vmatpush1.msra.mxu0 0.0
        %1122 = vmatprep.subr.mxu0 0.0
        %1123 = vmatpush1.msra.mxu0 0.0
        %1124 = vmatprep.subr.mxu0 0.0
        %1125 = vmatpush1.msra.mxu0 0.0
        %1126 = vmatprep.subr.mxu0 0.0
        %1127 = vmatpush1.msra.mxu0 0.0
        %1128 = vmatprep.subr.mxu0 0.0
        %1129 = vmatpush1.msra.mxu0 0.0
        %1130 = vmatprep.subr.mxu0 0.0
        %1131 = vmatpush1.msra.mxu0 0.0
        %1132 = vmatprep.subr.mxu0 0.0
        %1133 = vmatpush1.msra.mxu0 0.0
        %1134 = vmatprep.subr.mxu0 0.0
        %1135 = vmatpush1.msra.mxu0 0.0
        %1136 = vmatprep.subr.mxu0 0.0
        %1137 = vmatpush1.msra.mxu0 0.0
        %1138 = vmatprep.subr.mxu0 0.0
        %1139 = vmatpush1.msra.mxu0 0.0
        %1140 = vmatprep.subr.mxu0 0.0
        %1141 = vmatpush1.msra.mxu0 0.0
        %1142 = vmatprep.subr.mxu0 0.0
        %1143 = vmatpush1.msra.mxu0 0.0
        %1144 = vmatprep.subr.mxu0 0.0
        %1145 = vmatpush1.msra.mxu0 0.0
        %1146 = vmatprep.subr.mxu0 0.0
        %1147 = vmatpush1.msra.mxu0 0.0
        %1148 = vmatprep.subr.mxu0 0.0
        %1149 = vmatpush1.msra.mxu0 0.0
        %1150 = vmatprep.subr.mxu0 0.0
        %1151 = vmatpush1.msra.mxu0 0.0
        %1152 = vmatprep.mubr.f32.mxu0 0.0
        %1153 = vmatmul.mubr.f32.gmra.mrb[0].mxu0 %v1086
        %v1154 = vpop.f32.mrb[0].mxu0
        %v1155 = vadd.f32 0.0, %v1154
        %v1156 = vpop.f32.mrb[0].mxu0
        %1157 = vdwg.mxu0
        %v1159 = vsel %vm374, %v931, 0
        %1161 = vmatprep.subr.mxu0 0.0
        %1162 = vmatpush1.msra.mxu0 %v1009
        %1163 = vmatprep.subr.mxu0 0.0
        %1164 = vmatpush1.msra.mxu0 0.0
        %1165 = vmatprep.subr.mxu0 0.0
        %1166 = vmatpush1.msra.mxu0 0.0
        %1167 = vmatprep.subr.mxu0 0.0
        %1168 = vmatpush1.msra.mxu0 0.0
        %1169 = vmatprep.subr.mxu0 0.0
        %1170 = vmatpush1.msra.mxu0 0.0
        %1171 = vmatprep.subr.mxu0 0.0
        %1172 = vmatpush1.msra.mxu0 0.0
        %1173 = vmatprep.subr.mxu0 0.0
        %1174 = vmatpush1.msra.mxu0 0.0
        %1175 = vmatprep.subr.mxu0 0.0
        %1176 = vmatpush1.msra.mxu0 0.0
        %1177 = vmatprep.subr.mxu0 0.0
        %1178 = vmatpush1.msra.mxu0 0.0
        %1179 = vmatprep.subr.mxu0 0.0
        %1180 = vmatpush1.msra.mxu0 0.0
        %1181 = vmatprep.subr.mxu0 0.0
        %1182 = vmatpush1.msra.mxu0 0.0
        %1183 = vmatprep.subr.mxu0 0.0
        %1184 = vmatpush1.msra.mxu0 0.0
        %1185 = vmatprep.subr.mxu0 0.0
        %1186 = vmatpush1.msra.mxu0 0.0
        %1187 = vmatprep.subr.mxu0 0.0
        %1188 = vmatpush1.msra.mxu0 0.0
        %1189 = vmatprep.subr.mxu0 0.0
        %1190 = vmatpush1.msra.mxu0 0.0
        %1191 = vmatprep.subr.mxu0 0.0
        %1192 = vmatpush1.msra.mxu0 0.0
        %1193 = vmatprep.subr.mxu0 0.0
        %1194 = vmatpush1.msra.mxu0 0.0
        %1195 = vmatprep.subr.mxu0 0.0
        %1196 = vmatpush1.msra.mxu0 0.0
        %1197 = vmatprep.subr.mxu0 0.0
        %1198 = vmatpush1.msra.mxu0 0.0
        %1199 = vmatprep.subr.mxu0 0.0
        %1200 = vmatpush1.msra.mxu0 0.0
        %1201 = vmatprep.subr.mxu0 0.0
        %1202 = vmatpush1.msra.mxu0 0.0
        %1203 = vmatprep.subr.mxu0 0.0
        %1204 = vmatpush1.msra.mxu0 0.0
        %1205 = vmatprep.subr.mxu0 0.0
        %1206 = vmatpush1.msra.mxu0 0.0
        %1207 = vmatprep.subr.mxu0 0.0
        %1208 = vmatpush1.msra.mxu0 0.0
        %1209 = vmatprep.subr.mxu0 0.0
        %1210 = vmatpush1.msra.mxu0 0.0
        %1211 = vmatprep.subr.mxu0 0.0
        %1212 = vmatpush1.msra.mxu0 0.0
        %1213 = vmatprep.subr.mxu0 0.0
        %1214 = vmatpush1.msra.mxu0 0.0
        %1215 = vmatprep.subr.mxu0 0.0
        %1216 = vmatpush1.msra.mxu0 0.0
        %1217 = vmatprep.subr.mxu0 0.0
        %1218 = vmatpush1.msra.mxu0 0.0
        %1219 = vmatprep.subr.mxu0 0.0
        %1220 = vmatpush1.msra.mxu0 0.0
        %1221 = vmatprep.subr.mxu0 0.0
        %1222 = vmatpush1.msra.mxu0 0.0
        %1223 = vmatprep.subr.mxu0 0.0
        %1224 = vmatpush1.msra.mxu0 0.0
        %1225 = vmatprep.mubr.f32.mxu0 0.0
        %1226 = vmatmul.mubr.f32.gmra.mrb[0].mxu0 %v1159
        %v1227 = vpop.f32.mrb[0].mxu0
        %v1228 = vadd.f32 0.0, %v1227
        %v1229 = vpop.f32.mrb[0].mxu0
        %1230 = vdwg.mxu0
        %v1232 = vsel %vm374, %v1004, 0
        %1234 = vmatprep.subr.mxu0 0.0
        %1235 = vmatpush1.msra.mxu0 %v1010
        %1236 = vmatprep.subr.mxu0 0.0
        %1237 = vmatpush1.msra.mxu0 0.0
        %1238 = vmatprep.subr.mxu0 0.0
        %1239 = vmatpush1.msra.mxu0 0.0
        %1240 = vmatprep.subr.mxu0 0.0
        %1241 = vmatpush1.msra.mxu0 0.0
        %1242 = vmatprep.subr.mxu0 0.0
        %1243 = vmatpush1.msra.mxu0 0.0
        %1244 = vmatprep.subr.mxu0 0.0
        %1245 = vmatpush1.msra.mxu0 0.0
        %1246 = vmatprep.subr.mxu0 0.0
        %1247 = vmatpush1.msra.mxu0 0.0
        %1248 = vmatprep.subr.mxu0 0.0
        %1249 = vmatpush1.msra.mxu0 0.0
        %1250 = vmatprep.subr.mxu0 0.0
        %1251 = vmatpush1.msra.mxu0 0.0
        %1252 = vmatprep.subr.mxu0 0.0
        %1253 = vmatpush1.msra.mxu0 0.0
        %1254 = vmatprep.subr.mxu0 0.0
        %1255 = vmatpush1.msra.mxu0 0.0
        %1256 = vmatprep.subr.mxu0 0.0
        %1257 = vmatpush1.msra.mxu0 0.0
        %1258 = vmatprep.subr.mxu0 0.0
        %1259 = vmatpush1.msra.mxu0 0.0
        %1260 = vmatprep.subr.mxu0 0.0
        %1261 = vmatpush1.msra.mxu0 0.0
        %1262 = vmatprep.subr.mxu0 0.0
        %1263 = vmatpush1.msra.mxu0 0.0
        %1264 = vmatprep.subr.mxu0 0.0
        %1265 = vmatpush1.msra.mxu0 0.0
        %1266 = vmatprep.subr.mxu0 0.0
        %1267 = vmatpush1.msra.mxu0 0.0
        %1268 = vmatprep.subr.mxu0 0.0
        %1269 = vmatpush1.msra.mxu0 0.0
        %1270 = vmatprep.subr.mxu0 0.0
        %1271 = vmatpush1.msra.mxu0 0.0
        %1272 = vmatprep.subr.mxu0 0.0
        %1273 = vmatpush1.msra.mxu0 0.0
        %1274 = vmatprep.subr.mxu0 0.0
        %1275 = vmatpush1.msra.mxu0 0.0
        %1276 = vmatprep.subr.mxu0 0.0
        %1277 = vmatpush1.msra.mxu0 0.0
        %1278 = vmatprep.subr.mxu0 0.0
        %1279 = vmatpush1.msra.mxu0 0.0
        %1280 = vmatprep.subr.mxu0 0.0
        %1281 = vmatpush1.msra.mxu0 0.0
        %1282 = vmatprep.subr.mxu0 0.0
        %1283 = vmatpush1.msra.mxu0 0.0
        %1284 = vmatprep.subr.mxu0 0.0
        %1285 = vmatpush1.msra.mxu0 0.0
        %1286 = vmatprep.subr.mxu0 0.0
        %1287 = vmatpush1.msra.mxu0 0.0
        %1288 = vmatprep.subr.mxu0 0.0
        %1289 = vmatpush1.msra.mxu0 0.0
        %1290 = vmatprep.subr.mxu0 0.0
        %1291 = vmatpush1.msra.mxu0 0.0
        %1292 = vmatprep.subr.mxu0 0.0
        %1293 = vmatpush1.msra.mxu0 0.0
        %1294 = vmatprep.subr.mxu0 0.0
        %1295 = vmatpush1.msra.mxu0 0.0
        %1296 = vmatprep.subr.mxu0 0.0
        %1297 = vmatpush1.msra.mxu0 0.0
        %1298 = vmatprep.mubr.f32.mxu0 0.0
        %1299 = vmatmul.mubr.f32.gmra.mrb[0].mxu0 %v1232
        %v1300 = vpop.f32.mrb[0].mxu0
        %v1301 = vadd.f32 0.0, %v1300
        %v1302 = vpop.f32.mrb[0].mxu0
        %1303 = vdwg.mxu0
        %v1304 = vsel %vm205, %v1082, 0.0
        %v1305 = vsel %vm205, %v1155, 0.0
        %v1306 = vadd.f32 %v1304, %v1305
        %v1307 = vsel %vm205, %v1228, 0.0
        %v1308 = vadd.f32 %v1306, %v1307
        %v1309 = vsel %vm205, %v1301, 0.0
        %v1310 = vadd.f32 %v1308, %v1309
        %v1311 = vadd.f32 %v1310, %v1011
        %v1312 = vld [vmem:[#allocation5 + $0xc2] ss:$0 sm:$0xff]
        %v1313 = vld [vmem:[#allocation5 + $0xc3] ss:$0 sm:$0xff]
        %v1314 = vadd.f32 %v174, %v1311
        %v1315 = vsel %vm205, %v1314, 0.0
        %1316 = vadd.xlane.f32.xlu0 %v1315
        %v1317 = vpop.xlane.xlu0 %1316
        %v1318 = vrcp.pop 32.0
        %v1319 = vmul.f32 %v1317, %v1318
        %v1320 = vsub.f32 %v1314, %v1319
        %v1321 = vmul.f32 %v1320, %v1320
        %v1322 = vsel %vm205, %v1321, 0.0
        %1323 = vadd.xlane.f32.xlu0 %v1322
        %v1324 = vpop.xlane.xlu0 %1323
        %v1325 = vmul.f32 %v1324, %v1318
        %v1326 = vadd.f32 %v1325, 1e-05
        %v1327 = vrsqrt.pop %v1326
        %v1328 = vmul.f32 %v1320, %v1327
        %v1329 = vmul.f32 %v1328, %v1312
        %v1330 = vadd.f32 %v1329, %v1313
        %v1331 = vld [vmem:[#allocation5 + $0x68] sm:$0xff]
        %v1332 = vld [vmem:[#allocation5 + $0x80] sm:$0xff]
        %v1333 = vld [vmem:[#allocation5 + $0x98] sm:$0xff]
        %v1334 = vld [vmem:[#allocation5 + $0xb0] sm:$0xff]
        %v1335 = vld [vmem:[#allocation5 + $0xc9] ss:$0 sm:$0xff]
        %v1336 = vld [vmem:[#allocation5 + $0x70] sm:$0xff]
        %v1337 = vld [vmem:[#allocation5 + $0x88] sm:$0xff]
        %v1338 = vld [vmem:[#allocation5 + $0xa0] sm:$0xff]
        %v1339 = vld [vmem:[#allocation5 + $0xb8] sm:$0xff]
        %v1340 = vld [vmem:[#allocation5 + $0xd1] ss:$0 sm:$0xff]
        %v1342 = vsel %vm205, %v1330, 0
        %1344 = vmatprep.subr.mxu0 0.0
        %1345 = vmatpush1.msra.mxu0 %v1331
        %1346 = vmatprep.subr.mxu0 0.0
        %1347 = vmatpush1.msra.mxu0 %v1332
        %1348 = vmatprep.subr.mxu0 0.0
        %1349 = vmatpush1.msra.mxu0 %v1333
        %1350 = vmatprep.subr.mxu0 0.0
        %1351 = vmatpush1.msra.mxu0 %v1334
        %1352 = vmatprep.subr.mxu0 0.0
        %1353 = vmatpush1.msra.mxu0 0.0
        %1354 = vmatprep.subr.mxu0 0.0
        %1355 = vmatpush1.msra.mxu0 0.0
        %1356 = vmatprep.subr.mxu0 0.0
        %1357 = vmatpush1.msra.mxu0 0.0
        %1358 = vmatprep.subr.mxu0 0.0
        %1359 = vmatpush1.msra.mxu0 0.0
        %1360 = vmatprep.subr.mxu0 0.0
        %1361 = vmatpush1.msra.mxu0 0.0
        %1362 = vmatprep.subr.mxu0 0.0
        %1363 = vmatpush1.msra.mxu0 0.0
        %1364 = vmatprep.subr.mxu0 0.0
        %1365 = vmatpush1.msra.mxu0 0.0
        %1366 = vmatprep.subr.mxu0 0.0
        %1367 = vmatpush1.msra.mxu0 0.0
        %1368 = vmatprep.subr.mxu0 0.0
        %1369 = vmatpush1.msra.mxu0 0.0
        %1370 = vmatprep.subr.mxu0 0.0
        %1371 = vmatpush1.msra.mxu0 0.0
        %1372 = vmatprep.subr.mxu0 0.0
        %1373 = vmatpush1.msra.mxu0 0.0
        %1374 = vmatprep.subr.mxu0 0.0
        %1375 = vmatpush1.msra.mxu0 0.0
        %1376 = vmatprep.subr.mxu0 0.0
        %1377 = vmatpush1.msra.mxu0 0.0
        %1378 = vmatprep.subr.mxu0 0.0
        %1379 = vmatpush1.msra.mxu0 0.0
        %1380 = vmatprep.subr.mxu0 0.0
        %1381 = vmatpush1.msra.mxu0 0.0
        %1382 = vmatprep.subr.mxu0 0.0
        %1383 = vmatpush1.msra.mxu0 0.0
        %1384 = vmatprep.subr.mxu0 0.0
        %1385 = vmatpush1.msra.mxu0 0.0
        %1386 = vmatprep.subr.mxu0 0.0
        %1387 = vmatpush1.msra.mxu0 0.0
        %1388 = vmatprep.subr.mxu0 0.0
        %1389 = vmatpush1.msra.mxu0 0.0
        %1390 = vmatprep.subr.mxu0 0.0
        %1391 = vmatpush1.msra.mxu0 0.0
        %1392 = vmatprep.subr.mxu0 0.0
        %1393 = vmatpush1.msra.mxu0 0.0
        %1394 = vmatprep.subr.mxu0 0.0
        %1395 = vmatpush1.msra.mxu0 0.0
        %1396 = vmatprep.subr.mxu0 0.0
        %1397 = vmatpush1.msra.mxu0 0.0
        %1398 = vmatprep.subr.mxu0 0.0
        %1399 = vmatpush1.msra.mxu0 0.0
        %1400 = vmatprep.subr.mxu0 0.0
        %1401 = vmatpush1.msra.mxu0 0.0
        %1402 = vmatprep.subr.mxu0 0.0
        %1403 = vmatpush1.msra.mxu0 0.0
        %1404 = vmatprep.subr.mxu0 0.0
        %1405 = vmatpush1.msra.mxu0 0.0
        %1406 = vmatprep.subr.mxu0 0.0
        %1407 = vmatpush1.msra.mxu0 0.0
        %1408 = vmatprep.mubr.f32.mxu0 0.0
        %1409 = vmatmul.mubr.f32.gmra.mrb[0].mxu0 %v1342
        %v1410 = vpop.f32.mrb[0].mxu0
        %v1411 = vadd.f32 %v1335, %v1410
        %v1412 = vpop.f32.mrb[0].mxu0
        %1413 = vdwg.mxu0
        %v1414 = vmul.f32 %v1411, %v1411
        %v1415 = vmul.f32 %v1411, %v1414
        %v1416 = vmul.f32 %v1415, 0.044715
        %v1417 = vadd.f32 %v1411, %v1416
        %v1418 = vmul.f32 %v1417, 0.7978846
        %v1419 = vtanh.pop %v1418
        %v1420 = vadd.f32 %v1419, 1.0
        %v1421 = vmul.f32 %v1420, 0.5
        %v1422 = vmul.f32 %v1411, %v1421
        %v1424 = vsel %vm205, %v1422, 0
        %1426 = vmatprep.subr.mxu0 0.0
        %1427 = vmatpush1.msra.mxu0 %v1336
        %1428 = vmatprep.subr.mxu0 0.0
        %1429 = vmatpush1.msra.mxu0 %v1337
        %1430 = vmatprep.subr.mxu0 0.0
        %1431 = vmatpush1.msra.mxu0 %v1338
        %1432 = vmatprep.subr.mxu0 0.0
        %1433 = vmatpush1.msra.mxu0 %v1339
        %1434 = vmatprep.subr.mxu0 0.0
        %1435 = vmatpush1.msra.mxu0 0.0
        %1436 = vmatprep.subr.mxu0 0.0
        %1437 = vmatpush1.msra.mxu0 0.0
        %1438 = vmatprep.subr.mxu0 0.0
        %1439 = vmatpush1.msra.mxu0 0.0
        %1440 = vmatprep.subr.mxu0 0.0
        %1441 = vmatpush1.msra.mxu0 0.0
        %1442 = vmatprep.subr.mxu0 0.0
        %1443 = vmatpush1.msra.mxu0 0.0
        %1444 = vmatprep.subr.mxu0 0.0
        %1445 = vmatpush1.msra.mxu0 0.0
        %1446 = vmatprep.subr.mxu0 0.0
        %1447 = vmatpush1.msra.mxu0 0.0
        %1448 = vmatprep.subr.mxu0 0.0
        %1449 = vmatpush1.msra.mxu0 0.0
        %1450 = vmatprep.subr.mxu0 0.0
        %1451 = vmatpush1.msra.mxu0 0.0
        %1452 = vmatprep.subr.mxu0 0.0
        %1453 = vmatpush1.msra.mxu0 0.0
        %1454 = vmatprep.subr.mxu0 0.0
        %1455 = vmatpush1.msra.mxu0 0.0
        %1456 = vmatprep.subr.mxu0 0.0
        %1457 = vmatpush1.msra.mxu0 0.0
        %1458 = vmatprep.subr.mxu0 0.0
        %1459 = vmatpush1.msra.mxu0 0.0
        %1460 = vmatprep.subr.mxu0 0.0
        %1461 = vmatpush1.msra.mxu0 0.0
        %1462 = vmatprep.subr.mxu0 0.0
        %1463 = vmatpush1.msra.mxu0 0.0
        %1464 = vmatprep.subr.mxu0 0.0
        %1465 = vmatpush1.msra.mxu0 0.0
        %1466 = vmatprep.subr.mxu0 0.0
        %1467 = vmatpush1.msra.mxu0 0.0
        %1468 = vmatprep.subr.mxu0 0.0
        %1469 = vmatpush1.msra.mxu0 0.0
        %1470 = vmatprep.subr.mxu0 0.0
        %1471 = vmatpush1.msra.mxu0 0.0
        %1472 = vmatprep.subr.mxu0 0.0
        %1473 = vmatpush1.msra.mxu0 0.0
        %1474 = vmatprep.subr.mxu0 0.0
        %1475 = vmatpush1.msra.mxu0 0.0
        %1476 = vmatprep.subr.mxu0 0.0
        %1477 = vmatpush1.msra.mxu0 0.0
        %1478 = vmatprep.subr.mxu0 0.0
        %1479 = vmatpush1.msra.mxu0 0.0
        %1480 = vmatprep.subr.mxu0 0.0
        %1481 = vmatpush1.msra.mxu0 0.0
        %1482 = vmatprep.subr.mxu0 0.0
        %1483 = vmatpush1.msra.mxu0 0.0
        %1484 = vmatprep.subr.mxu0 0.0
        %1485 = vmatpush1.msra.mxu0 0.0
        %1486 = vmatprep.subr.mxu0 0.0
        %1487 = vmatpush1.msra.mxu0 0.0
        %1488 = vmatprep.subr.mxu0 0.0
        %1489 = vmatpush1.msra.mxu0 0.0
        %1490 = vmatprep.mubr.f32.mxu0 0.0
        %1491 = vmatmul.mubr.f32.gmra.mrb[0].mxu0 %v1424
        %v1492 = vpop.f32.mrb[0].mxu0
        %v1493 = vadd.f32 %v1340, %v1492
        %v1494 = vpop.f32.mrb[0].mxu0
        %1495 = vdwg.mxu0
        %v1496 = vld [vmem:[#allocation5 + $0xca] ss:$0 sm:$0xff]
        %v1497 = vld [vmem:[#allocation5 + $0xcb] ss:$0 sm:$0xff]
        %v1498 = vsel %vm205, %v1493, 0.0
        %1499 = vadd.xlane.f32.xlu0 %v1498
        %v1500 = vpop.xlane.xlu0 %1499
        %v1501 = vmul.f32 %v1500, %v1318
        %v1502 = vsub.f32 %v1493, %v1501
        %v1503 = vmul.f32 %v1502, %v1502
        %v1504 = vsel %vm205, %v1503, 0.0
        %1505 = vadd.xlane.f32.xlu0 %v1504
        %v1506 = vpop.xlane.xlu0 %1505
        %v1507 = vmul.f32 %v1506, %v1318
        %v1508 = vadd.f32 %v1507, 1e-05
        %v1509 = vrsqrt.pop %v1508
        %v1510 = vmul.f32 %v1502, %v1509
        %v1511 = vmul.f32 %v1510, %v1496
        %v1512 = vadd.f32 %v1511, %v1497
        %1513 = vst.msk [vmem:[%s173] sm:$0xff] %vm205, %v1512
        %s1514 = sand.u32 %s75, 1
        %s1515 = scalar_lea.sflag [#allocation4], %s1514
        %s1516 = sand.u32 %s75, 1
        %s1517 = smul.addr %s1516, 8
        %s1518 = scalar_lea.vmem [#allocation7], %s1517
        // Predicated region
        $region37: #{tpu_custom_call.1} parent=27 // pred_check
          %p1519 = pneg %p85
        $region38: #{tpu_custom_call.1} parent=27 // pred_check_branch
          %1521 = sbr.rel (%p1519) target = $region40
        $region39: #{tpu_custom_call.1} parent=27 // pred_region
          %s1523 = ssub.s32 128, 128
          %1524 = vsyncadd %s1515, %s1523
          %s1525 = smul.addr %s20, 128
          %s1526 = scalar_lea.hbm %s2, %s1525
          %s1528 = sshll.u32 %s1518, 4
          %s1529 = int_to_ptr.vmem [resolvable:$true] %s1528
          %1531 = dma.vmem_to_hbm [thread:$0]  %s1529, 128, %s1526, %s1515
        $region40: #{tpu_custom_call.1} parent=27 // pred_fallthru
          _
      $region28: #{tpu_custom_call.1} parent=5 // pred_fallthru
        _
      %p1532 = scmp.le.s32.totalorder 2, %s15
      // Predicated region
      $region41: #{tpu_custom_call.1} parent=5 // pred_check
        %p1533 = pneg %p1532
      $region42: #{tpu_custom_call.1} parent=5 // pred_check_branch
        %1535 = sbr.rel (%p1533) target = $region44
      $region43: #{tpu_custom_call.1} parent=5 // pred_region
        %s1536 = ssub.s32 %s15, 2
        // Predicated region
        $region45: #{tpu_custom_call.1} parent=43 // pred_check
          %p1537 = pneg %p91
        $region46: #{tpu_custom_call.1} parent=43 // pred_check_branch
          %1539 = sbr.rel (%p1537) target = $region48
        $region47: #{tpu_custom_call.1} parent=43 // pred_region
          %s1540 = sand.u32 %s76, 1
          %s1541 = scalar_lea.sflag [#allocation4], %s1540
          %s1542 = sand.u32 %s76, 1
          %s1543 = smul.addr %s1542, 8
          %s1544 = scalar_lea.vmem [#allocation7], %s1543
          %1545 = dma.done %s1541, 128
        $region48: #{tpu_custom_call.1} parent=43 // pred_fallthru
          _
      $region44: #{tpu_custom_call.1} parent=5 // pred_fallthru
        _
    $region6: #{tpu_custom_call.1} parent=1 // loop_footer
      %s19 = sadd.s32 1, %s15
    $region7: #{tpu_custom_call.1} parent=1 // loop_footer_branch
      %14 = sbr.rel target = $region3
    $region8: #{tpu_custom_call.1} parent=1 // loop_exit
      _
    %1546 = vsyncpa [#allocation3], 1
    %s1547 = scalar_lea.sflag [#allocation3], 1
    %1548 = vsyncpa %s1547, 1
    %1549 = vsyncpa [#allocation6], 1
    %1550 = vsyncpa [#allocation4], 1
    %s1551 = scalar_lea.sflag [#allocation4], 1
    %1552 = vsyncpa %s1551, 1

</llo_original>
